<compile_context>
chip_gen: v6e
topology: v6e:2x2x1
jax: 0.10.0
libtpu: 0.0.40
codegen_flags: <defaults>
</compile_context>

<pallas_src>
import functools

import jax
import jax.numpy as jnp
from jax.experimental import pallas as pl
from jax.experimental.pallas import tpu as pltpu


def _pick_tile(n, candidates):
    for t in candidates:
        if n % t == 0:
            return t
    return n  # fall back to a single full-size block


# ----------------------------------------------------------------------------
# Kernel 1: fused pairwise squared distance + streaming top-(k+1) nearest.
# The (B, N, N) distance matrix never touches HBM; only (B, N, k+1) int32
# indices are emitted.
# ----------------------------------------------------------------------------
def knn_indices(x, k1):
    """x: (B, N, 3) f32 -> (B, N, k1) int32 indices of the k1 nearest points
    (self included, nearest first; ties broken by lowest index)."""
    B, N, C = x.shape
    assert N >= k1, "need at least k+1 points"
    # Small row tile keeps the 10-pass selection loop's live set near the vreg
    # file (removes spill ld/st traffic; v5e has a single vst slot).
    TI = _pick_tile(N, (64, 32, 16, 8))
    TJ = _pick_tile(N, (512, 256, 128))
    assert TJ >= k1, "column tile must hold at least k+1 candidates"

    # Tiny transposed copy so the column tile is lane-dense (3, TJ) while the
    # row tile gives (TI, 1) component columns — all distance math on the VPU,
    # no in-kernel transposes.
    xt = jnp.transpose(x, (0, 2, 1))                # (B, 3, N)

    def kernel(xr_ref, xc_ref, idx_ref, vals_sc, inds_sc):
        j = pl.program_id(2)

        @pl.when(j == 0)
        def _():
            vals_sc[...] = jnp.full(vals_sc.shape, jnp.inf, vals_sc.dtype)
            inds_sc[...] = jnp.zeros(inds_sc.shape, inds_sc.dtype)

        xr = xr_ref[...]                            # (TI, 3)
        xc = xc_ref[...]                            # (3, TJ)
        r0, r1, r2 = xr[:, 0:1], xr[:, 1:2], xr[:, 2:3]   # (TI, 1)
        c0, c1, c2 = xc[0:1, :], xc[1:2, :], xc[2:3, :]   # (1, TJ)

        # Exact f32 distances via broadcast FMAs on the VPU (no MXU K=3 dot);
        # d[i, i] == 0 exactly, so "self" is always the nearest candidate.
        inner = r0 * c0 + r1 * c1 + r2 * c2         # (TI, TJ)
        sq_r = r0 * r0 + r1 * r1 + r2 * r2          # (TI, 1)
        sq_c = c0 * c0 + c1 * c1 + c2 * c2          # (1, TJ)
        d = (sq_r + sq_c) - 2.0 * inner             # (TI, TJ)

        ti, tj = d.shape
        # Lazy (1, TJ) int32 column index — broadcast inside the selects only.
        col = jax.lax.broadcasted_iota(jnp.int32, (1, tj), 1) + j * tj
        big_i = jnp.int32(2 ** 30)

        # --- Stage 1: per-tile top-k1 over d alone (state untouched). -------
        tile_v, tile_i = [], []
        for _t in range(k1):
            m = jnp.min(d, axis=1, keepdims=True)                 # (TI, 1)
            is_m = d == m
            sel = jnp.min(jnp.where(is_m, col, big_i),
                          axis=1, keepdims=True)                  # lowest index
            tile_v.append(m)
            tile_i.append(sel)
            d = jnp.where(is_m & (col == sel), jnp.inf, d)        # invalidate in d only
        tile_v = jnp.concatenate(tile_v, axis=1)                  # (TI, k1)
        tile_i = jnp.concatenate(tile_i, axis=1)                  # (TI, k1) int32

        # --- Stage 2: tiny (TI, 2*k1) merge against the running state. ------
        cand_v = jnp.concatenate([vals_sc[...], tile_v], axis=1)
        cand_i = jnp.concatenate([inds_sc[...], tile_i], axis=1)
        new_v, new_i = [], []
        for _t in range(k1):
            m = jnp.min(cand_v, axis=1, keepdims=True)
            is_m = cand_v == m
            sel = jnp.min(jnp.where(is_m, cand_i, big_i), axis=1, keepdims=True)
            new_v.append(m)
            new_i.append(sel)
            cand_v = jnp.where(is_m & (cand_i == sel), jnp.inf, cand_v)
        vals_sc[...] = jnp.concatenate(new_v, axis=1)
        inds_sc[...] = jnp.concatenate(new_i, axis=1)

        @pl.when(j == pl.num_programs(2) - 1)
        def _():
            # (TI, k1) store is lane-sparse (10/128) but tiny; a lane-dense
            # (k1, N) layout would force TI % 128 == 0, conflicting with the
            # small TI chosen to keep the selection loop in vregs.
            idx_ref[...] = inds_sc[...]

    return pl.pallas_call(
        kernel,
        out_shape=jax.ShapeDtypeStruct((B, N, k1), jnp.int32),
        grid=(B, N // TI, N // TJ),
        in_specs=[
            pl.BlockSpec((None, TI, C), lambda b, i, j: (b, i, 0)),
            pl.BlockSpec((None, C, TJ), lambda b, i, j: (b, 0, j)),
        ],
        out_specs=pl.BlockSpec((None, TI, k1), lambda b, i, j: (b, i, 0)),
        scratch_shapes=[
            pltpu.VMEM((TI, k1), jnp.float32),      # running smallest distances
            pltpu.VMEM((TI, k1), jnp.int32),        # running indices (int32)
        ],
        compiler_params=pltpu.CompilerParams(
            dimension_semantics=("parallel", "parallel", "arbitrary")),
    )(x, xt)


# ----------------------------------------------------------------------------
# Kernel 2: umbrella-surface geometric features (N on lanes, K on sublanes).
#   input : (B, 3, K, N) phi-sorted relative neighbour coords
#   output: (B, 6, N)    mean over K of [pair-centroid xyz, signed unit normal]
# ----------------------------------------------------------------------------
def geom_features(comp):
    B, C, K, N = comp.shape
    TN = _pick_tile(N, (4096, 2048, 1024, 512, 256, 128))
    inv_k = 1.0 / float(K)

    def kernel(nbr_ref, out_ref):
        a = nbr_ref[...]                            # (3, K, TN)
        a1, a2, a3 = a[0], a[1], a[2]               # (K, TN) lane-dense

        def nxt(t):                                 # cyclic next neighbour along K
            return jnp.concatenate([t[1:, :], t[:1, :]], axis=0)

        b1, b2, b3 = nxt(a1), nxt(a2), nxt(a3)

        def kmean(t):                               # (K, TN) -> (1, TN): sublane reduce
            return jnp.sum(t, axis=0, keepdims=True) * inv_k

        # Centroid mean over K: mean(0.5*(a + roll(a))) == mean(a)  (exact,
        # roll is a permutation) -> no roll needed on the centroid path.
        cxm, cym, czm = kmean(a1), kmean(a2), kmean(a3)

        nx = a2 * b3 - a3 * b2                      # cross(v1, v2)
        ny = a3 * b1 - a1 * b3
        nz = a1 * b2 - a2 * b1

        # Match torch exactly: n / (||n|| + 1e-6); hemisphere sign from the
        # pair-centroid z (0.5*(a3+b3) > 0  <=>  a3+b3 > 0).
        inv = 1.0 / (jnp.sqrt(nx * nx + ny * ny + nz * nz) + 1e-6)
        s = jnp.where((a3 + b3) > 0.0, inv, -inv)
        nx = nx * s
        ny = ny * s
        nz = nz * s

        out_ref[...] = jnp.concatenate(
            [cxm, cym, czm, kmean(nx), kmean(ny), kmean(nz)],
            axis=0)                                 # (6, TN) lane-dense store

    return pl.pallas_call(
        kernel,
        out_shape=jax.ShapeDtypeStruct((B, 6, N), jnp.float32),
        grid=(B, N // TN),
        in_specs=[pl.BlockSpec((None, C, K, TN), lambda b, n: (b, 0, 0, n))],
        out_specs=pl.BlockSpec((None, 6, TN), lambda b, n: (b, 0, n)),
        compiler_params=pltpu.CompilerParams(
            dimension_semantics=("parallel", "parallel")),
    )(comp)


# ----------------------------------------------------------------------------
# Full forward (JAX glue around the two Pallas kernels)
# ----------------------------------------------------------------------------
@functools.partial(jax.jit, static_argnames=("k",))
def geometric_extractor(x, k=9):
    B, N, C = x.shape
    idx = knn_indices(x, k + 1)                     # Pallas kernel 1 (fused kNN)
    # TODO(synk): fuse this gather / arctan2 / argsort / take_along_axis /
    # transpose glue into a Pallas kernel (needs in-kernel dynamic gather plus
    # a k=9 sorting network); kept in XLA for lowering robustness.
    nbr = x[jnp.arange(B)[:, None, None], idx]      # (B, N, k+1, 3) gather
    rel = (nbr - x[:, :, None, :])[:, :, 1:, :]     # drop self -> (B, N, k, 3)
    # xyz2sphere(...)[..., 2] == phi = atan2(y, x); normalization is monotone.
    phi = jnp.arctan2(rel[..., 1], rel[..., 0])     # (B, N, k)
    order = jnp.argsort(phi, axis=-1)
    rel_sorted = jnp.take_along_axis(rel, order[..., None], axis=2)  # resort_points
    comp = jnp.transpose(rel_sorted, (0, 3, 2, 1))  # (B, 3, k, N): N on lanes
    feat = geom_features(comp)                      # Pallas kernel 2 -> (B, 6, N)
    return jnp.transpose(feat, (0, 2, 1))           # (B, N, 6)


# ----------------------------------------------------------------------------
# Deterministic init for mlp1/mlp2/bn1/bn2 (present in __init__ but NOT used by
# forward() in the reference module — dead parameters).
# ----------------------------------------------------------------------------
def init_unused_params():
    kw1, kw2 = jax.random.split(jax.random.PRNGKey(42))
    return {
        "mlp1_w": jax.random.normal(kw1, (10, 7), jnp.float32) * 0.1,
        "mlp1_b": jnp.zeros((10,), jnp.float32),
        "mlp2_w": jax.random.normal(kw2, (10, 10), jnp.float32) * 0.1,
        "mlp2_b": jnp.zeros((10,), jnp.float32),
        "bn1_gamma": jnp.ones((10,), jnp.float32),
        "bn1_beta": jnp.zeros((10,), jnp.float32),
        "bn2_gamma": jnp.ones((10,), jnp.float32),
        "bn2_beta": jnp.zeros((10,), jnp.float32),
    }


# ----------------------------------------------------------------------------
# Pure-JAX reference for validation
# ----------------------------------------------------------------------------
def reference_forward(x, k=9):
    B, N, C = x.shape
    sq = jnp.sum(x * x, axis=-1)
    inner = jnp.einsum("bnc,bmc->bnm", x, x, precision=jax.lax.Precision.HIGHEST)
    dist = sq[:, :, None] + sq[:, None, :] - 2.0 * inner
    _, idx = jax.lax.top_k(-dist, k + 1)
    nbr = x[jnp.arange(B)[:, None, None], idx]
    rel = (nbr - x[:, :, None, :])[:, :, 1:, :]
    phi = jnp.arctan2(rel[..., 1], rel[..., 0])
    order = jnp.argsort(phi, axis=-1)
    rs = jnp.take_along_axis(rel, order[..., None], axis=2)
    v1 = rs
    v2 = jnp.roll(rs, -1, axis=2)
    cent = 0.5 * (v1 + v2)
    nrm = jnp.cross(v1, v2)
    nrm = nrm / (jnp.linalg.norm(nrm, axis=-1, keepdims=True) + 1e-6)
    sign = jnp.where(cent[..., 2] > 0, 1.0, -1.0)[..., None]
    nrm = nrm * sign
    feat = jnp.concatenate([cent, nrm], axis=-1)
    return jnp.mean(feat, axis=2)


if __name__ == "__main__":
    B, N, C, k = 2, 16, 3, 9
    key = jax.random.PRNGKey(0)
    x = jax.random.normal(key, (B, N, C), dtype=jnp.float32)

    _ = init_unused_params()  # deterministic, unused in forward (matches module)

    feat = jax.block_until_ready(geometric_extractor(x, k=k))
    assert feat.shape == (B, N, 6), feat.shape
    assert bool(jnp.all(jnp.isfinite(feat)))

    ref = jax.block_until_ready(reference_forward(x, k=k))
    err = float(jnp.max(jnp.abs(feat - ref)))
    assert err < 5e-3, err

    print("KERNEL_OK")
</pallas_src>

<mosaic_0001>
module attributes {stable_mosaic.version = 11 : i64} {
  func.func @kernel(%arg0: i32, %arg1: i32, %arg2: i32, %arg3: memref<1x16x3xf32, #tpu.memory_space<vmem>>, %arg4: memref<1x3x16xf32, #tpu.memory_space<vmem>>, %arg5: memref<1x16x10xi32, #tpu.memory_space<vmem>>, %arg6: memref<16x10xf32, #tpu.memory_space<vmem>>, %arg7: memref<16x10xi32, #tpu.memory_space<vmem>>) attributes {dimension_semantics = [#tpu.dimension_semantics<parallel>, #tpu.dimension_semantics<parallel>, #tpu.dimension_semantics<arbitrary>], iteration_bounds = array<i64: 2, 1, 1>, scalar_prefetch = 0 : i64, scratch_operands = 2 : i64, tpu.core_type = #tpu.core_type<tc>, window_params = [{transform_indices = @transform_0, window_bounds = array<i64: 1, 16, 3>}, {transform_indices = @transform_1, window_bounds = array<i64: 1, 3, 16>}, {transform_indices = @transform_2, window_bounds = array<i64: 1, 16, 10>}]} {
    %c0_i32 = arith.constant 0 : i32
    %0 = arith.cmpi eq, %arg2, %c0_i32 : i32
    %1 = arith.extui %0 : i1 to i32
    %c0_i32_0 = arith.constant 0 : i32
    %2 = arith.cmpi ne, %1, %c0_i32_0 : i32
    scf.if %2 {
      %cst_93 = arith.constant 0x7F800000 : f32
      %336 = vector.broadcast %cst_93 : f32 to vector<16x10xf32>
      %c0_94 = arith.constant 0 : index
      %c0_95 = arith.constant 0 : index
      %337 = vector.load %arg6[%c0_94, %c0_95] : memref<16x10xf32, #tpu.memory_space<vmem>>, vector<16x10xf32>
      tpu.vector_store %arg6[%c0_94, %c0_95], %336 {strides = array<i32>} : memref<16x10xf32, #tpu.memory_space<vmem>>, vector<16x10xf32>,
      %c0_i32_96 = arith.constant 0 : i32
      %338 = vector.broadcast %c0_i32_96 : i32 to vector<16x10xi32>
      %c0_97 = arith.constant 0 : index
      %c0_98 = arith.constant 0 : index
      %339 = vector.load %arg7[%c0_97, %c0_98] : memref<16x10xi32, #tpu.memory_space<vmem>>, vector<16x10xi32>
      tpu.vector_store %arg7[%c0_97, %c0_98], %338 {strides = array<i32>} : memref<16x10xi32, #tpu.memory_space<vmem>>, vector<16x10xi32>,
    } else {
    }
    %c0 = arith.constant 0 : index
    %c0_1 = arith.constant 0 : index
    %c0_2 = arith.constant 0 : index
    %3 = vector.load %arg3[%c0, %c0_1, %c0_2] : memref<1x16x3xf32, #tpu.memory_space<vmem>>, vector<1x16x3xf32>
    %4 = vector.shape_cast %3 : vector<1x16x3xf32> to vector<16x3xf32>
    %c0_3 = arith.constant 0 : index
    %c0_4 = arith.constant 0 : index
    %c0_5 = arith.constant 0 : index
    %5 = vector.load %arg4[%c0_3, %c0_4, %c0_5] : memref<1x3x16xf32, #tpu.memory_space<vmem>>, vector<1x3x16xf32>
    %6 = vector.shape_cast %5 : vector<1x3x16xf32> to vector<3x16xf32>
    %7 = vector.extract_strided_slice %4 {offsets = [0, 0], sizes = [16, 1], strides = [1, 1]} : vector<16x3xf32> to vector<16x1xf32>
    %8 = vector.extract_strided_slice %4 {offsets = [0, 1], sizes = [16, 1], strides = [1, 1]} : vector<16x3xf32> to vector<16x1xf32>
    %9 = vector.extract_strided_slice %4 {offsets = [0, 2], sizes = [16, 1], strides = [1, 1]} : vector<16x3xf32> to vector<16x1xf32>
    %10 = vector.extract_strided_slice %6 {offsets = [0, 0], sizes = [1, 16], strides = [1, 1]} : vector<3x16xf32> to vector<1x16xf32>
    %11 = vector.extract_strided_slice %6 {offsets = [1, 0], sizes = [1, 16], strides = [1, 1]} : vector<3x16xf32> to vector<1x16xf32>
    %12 = vector.extract_strided_slice %6 {offsets = [2, 0], sizes = [1, 16], strides = [1, 1]} : vector<3x16xf32> to vector<1x16xf32>
    %13 = vector.broadcast %7 : vector<16x1xf32> to vector<16x16xf32>
    %14 = vector.broadcast %10 : vector<1x16xf32> to vector<16x16xf32>
    %15 = arith.mulf %13, %14 : vector<16x16xf32>
    %16 = vector.broadcast %8 : vector<16x1xf32> to vector<16x16xf32>
    %17 = vector.broadcast %11 : vector<1x16xf32> to vector<16x16xf32>
    %18 = arith.mulf %16, %17 : vector<16x16xf32>
    %19 = arith.addf %15, %18 : vector<16x16xf32>
    %20 = vector.broadcast %9 : vector<16x1xf32> to vector<16x16xf32>
    %21 = vector.broadcast %12 : vector<1x16xf32> to vector<16x16xf32>
    %22 = arith.mulf %20, %21 : vector<16x16xf32>
    %23 = arith.addf %19, %22 : vector<16x16xf32>
    %24 = arith.mulf %7, %7 : vector<16x1xf32>
    %25 = arith.mulf %8, %8 : vector<16x1xf32>
    %26 = arith.addf %24, %25 : vector<16x1xf32>
    %27 = arith.mulf %9, %9 : vector<16x1xf32>
    %28 = arith.addf %26, %27 : vector<16x1xf32>
    %29 = arith.mulf %10, %10 : vector<1x16xf32>
    %30 = arith.mulf %11, %11 : vector<1x16xf32>
    %31 = arith.addf %29, %30 : vector<1x16xf32>
    %32 = arith.mulf %12, %12 : vector<1x16xf32>
    %33 = arith.addf %31, %32 : vector<1x16xf32>
    %34 = vector.broadcast %28 : vector<16x1xf32> to vector<16x16xf32>
    %35 = vector.broadcast %33 : vector<1x16xf32> to vector<16x16xf32>
    %36 = arith.addf %34, %35 : vector<16x16xf32>
    %cst = arith.constant 2.000000e+00 : f32
    %37 = vector.broadcast %cst : f32 to vector<16x16xf32>
    %38 = arith.mulf %37, %23 : vector<16x16xf32>
    %39 = arith.subf %36, %38 : vector<16x16xf32>
    %40 = tpu.iota {dimensions = array<i32: 1>} : vector<1x16xi32>
    %c16_i32 = arith.constant 16 : i32
    %41 = arith.muli %arg2, %c16_i32 : i32
    %42 = vector.broadcast %41 : i32 to vector<1x16xi32>
    %43 = arith.addi %40, %42 : vector<1x16xi32>
    %cst_6 = arith.constant dense<0x7F800000> : vector<16xf32>
    %44 = vector.multi_reduction <minimumf>, %39, %cst_6 [1] : vector<16x16xf32> to vector<16xf32>
    %45 = vector.shape_cast %44 : vector<16xf32> to vector<16x1xf32>
    %46 = vector.broadcast %45 : vector<16x1xf32> to vector<16x16xf32>
    %47 = arith.cmpf oeq, %39, %46 : vector<16x16xf32>
    %c1073741824_i32 = arith.constant 1073741824 : i32
    %48 = vector.shape_cast %43 : vector<1x16xi32> to vector<1x16xi32>
    %49 = vector.broadcast %48 : vector<1x16xi32> to vector<16x16xi32>
    %50 = vector.broadcast %c1073741824_i32 : i32 to vector<16x16xi32>
    %51 = arith.select %47, %49, %50 : vector<16x16xi1>, vector<16x16xi32>
    %cst_7 = arith.constant dense<2147483647> : vector<16xi32>
    %52 = vector.multi_reduction <minsi>, %51, %cst_7 [1] : vector<16x16xi32> to vector<16xi32>
    %53 = vector.shape_cast %52 : vector<16xi32> to vector<16x1xi32>
    %54 = vector.broadcast %43 : vector<1x16xi32> to vector<16x16xi32>
    %55 = vector.broadcast %53 : vector<16x1xi32> to vector<16x16xi32>
    %56 = arith.cmpi eq, %54, %55 : vector<16x16xi32>
    %57 = arith.andi %47, %56 : vector<16x16xi1>
    %cst_8 = arith.constant 0x7F800000 : f32
    %58 = vector.broadcast %cst_8 : f32 to vector<16x16xf32>
    %59 = arith.select %57, %58, %39 : vector<16x16xi1>, vector<16x16xf32>
    %cst_9 = arith.constant dense<0x7F800000> : vector<16xf32>
    %60 = vector.multi_reduction <minimumf>, %59, %cst_9 [1] : vector<16x16xf32> to vector<16xf32>
    %61 = vector.shape_cast %60 : vector<16xf32> to vector<16x1xf32>
    %62 = vector.broadcast %61 : vector<16x1xf32> to vector<16x16xf32>
    %63 = arith.cmpf oeq, %59, %62 : vector<16x16xf32>
    %c1073741824_i32_10 = arith.constant 1073741824 : i32
    %64 = vector.shape_cast %43 : vector<1x16xi32> to vector<1x16xi32>
    %65 = vector.broadcast %64 : vector<1x16xi32> to vector<16x16xi32>
    %66 = vector.broadcast %c1073741824_i32_10 : i32 to vector<16x16xi32>
    %67 = arith.select %63, %65, %66 : vector<16x16xi1>, vector<16x16xi32>
    %cst_11 = arith.constant dense<2147483647> : vector<16xi32>
    %68 = vector.multi_reduction <minsi>, %67, %cst_11 [1] : vector<16x16xi32> to vector<16xi32>
    %69 = vector.shape_cast %68 : vector<16xi32> to vector<16x1xi32>
    %70 = vector.broadcast %43 : vector<1x16xi32> to vector<16x16xi32>
    %71 = vector.broadcast %69 : vector<16x1xi32> to vector<16x16xi32>
    %72 = arith.cmpi eq, %70, %71 : vector<16x16xi32>
    %73 = arith.andi %63, %72 : vector<16x16xi1>
    %cst_12 = arith.constant 0x7F800000 : f32
    %74 = vector.broadcast %cst_12 : f32 to vector<16x16xf32>
    %75 = arith.select %73, %74, %59 : vector<16x16xi1>, vector<16x16xf32>
    %cst_13 = arith.constant dense<0x7F800000> : vector<16xf32>
    %76 = vector.multi_reduction <minimumf>, %75, %cst_13 [1] : vector<16x16xf32> to vector<16xf32>
    %77 = vector.shape_cast %76 : vector<16xf32> to vector<16x1xf32>
    %78 = vector.broadcast %77 : vector<16x1xf32> to vector<16x16xf32>
    %79 = arith.cmpf oeq, %75, %78 : vector<16x16xf32>
    %c1073741824_i32_14 = arith.constant 1073741824 : i32
    %80 = vector.shape_cast %43 : vector<1x16xi32> to vector<1x16xi32>
    %81 = vector.broadcast %80 : vector<1x16xi32> to vector<16x16xi32>
    %82 = vector.broadcast %c1073741824_i32_14 : i32 to vector<16x16xi32>
    %83 = arith.select %79, %81, %82 : vector<16x16xi1>, vector<16x16xi32>
    %cst_15 = arith.constant dense<2147483647> : vector<16xi32>
    %84 = vector.multi_reduction <minsi>, %83, %cst_15 [1] : vector<16x16xi32> to vector<16xi32>
    %85 = vector.shape_cast %84 : vector<16xi32> to vector<16x1xi32>
    %86 = vector.broadcast %43 : vector<1x16xi32> to vector<16x16xi32>
    %87 = vector.broadcast %85 : vector<16x1xi32> to vector<16x16xi32>
    %88 = arith.cmpi eq, %86, %87 : vector<16x16xi32>
    %89 = arith.andi %79, %88 : vector<16x16xi1>
    %cst_16 = arith.constant 0x7F800000 : f32
    %90 = vector.broadcast %cst_16 : f32 to vector<16x16xf32>
    %91 = arith.select %89, %90, %75 : vector<16x16xi1>, vector<16x16xf32>
    %cst_17 = arith.constant dense<0x7F800000> : vector<16xf32>
    %92 = vector.multi_reduction <minimumf>, %91, %cst_17 [1] : vector<16x16xf32> to vector<16xf32>
    %93 = vector.shape_cast %92 : vector<16xf32> to vector<16x1xf32>
    %94 = vector.broadcast %93 : vector<16x1xf32> to vector<16x16xf32>
    %95 = arith.cmpf oeq, %91, %94 : vector<16x16xf32>
    %c1073741824_i32_18 = arith.constant 1073741824 : i32
    %96 = vector.shape_cast %43 : vector<1x16xi32> to vector<1x16xi32>
    %97 = vector.broadcast %96 : vector<1x16xi32> to vector<16x16xi32>
    %98 = vector.broadcast %c1073741824_i32_18 : i32 to vector<16x16xi32>
    %99 = arith.select %95, %97, %98 : vector<16x16xi1>, vector<16x16xi32>
    %cst_19 = arith.constant dense<2147483647> : vector<16xi32>
    %100 = vector.multi_reduction <minsi>, %99, %cst_19 [1] : vector<16x16xi32> to vector<16xi32>
    %101 = vector.shape_cast %100 : vector<16xi32> to vector<16x1xi32>
    %102 = vector.broadcast %43 : vector<1x16xi32> to vector<16x16xi32>
    %103 = vector.broadcast %101 : vector<16x1xi32> to vector<16x16xi32>
    %104 = arith.cmpi eq, %102, %103 : vector<16x16xi32>
    %105 = arith.andi %95, %104 : vector<16x16xi1>
    %cst_20 = arith.constant 0x7F800000 : f32
    %106 = vector.broadcast %cst_20 : f32 to vector<16x16xf32>
    %107 = arith.select %105, %106, %91 : vector<16x16xi1>, vector<16x16xf32>
    %cst_21 = arith.constant dense<0x7F800000> : vector<16xf32>
    %108 = vector.multi_reduction <minimumf>, %107, %cst_21 [1] : vector<16x16xf32> to vector<16xf32>
    %109 = vector.shape_cast %108 : vector<16xf32> to vector<16x1xf32>
    %110 = vector.broadcast %109 : vector<16x1xf32> to vector<16x16xf32>
    %111 = arith.cmpf oeq, %107, %110 : vector<16x16xf32>
    %c1073741824_i32_22 = arith.constant 1073741824 : i32
    %112 = vector.shape_cast %43 : vector<1x16xi32> to vector<1x16xi32>
    %113 = vector.broadcast %112 : vector<1x16xi32> to vector<16x16xi32>
    %114 = vector.broadcast %c1073741824_i32_22 : i32 to vector<16x16xi32>
    %115 = arith.select %111, %113, %114 : vector<16x16xi1>, vector<16x16xi32>
    %cst_23 = arith.constant dense<2147483647> : vector<16xi32>
    %116 = vector.multi_reduction <minsi>, %115, %cst_23 [1] : vector<16x16xi32> to vector<16xi32>
    %117 = vector.shape_cast %116 : vector<16xi32> to vector<16x1xi32>
    %118 = vector.broadcast %43 : vector<1x16xi32> to vector<16x16xi32>
    %119 = vector.broadcast %117 : vector<16x1xi32> to vector<16x16xi32>
    %120 = arith.cmpi eq, %118, %119 : vector<16x16xi32>
    %121 = arith.andi %111, %120 : vector<16x16xi1>
    %cst_24 = arith.constant 0x7F800000 : f32
    %122 = vector.broadcast %cst_24 : f32 to vector<16x16xf32>
    %123 = arith.select %121, %122, %107 : vector<16x16xi1>, vector<16x16xf32>
    %cst_25 = arith.constant dense<0x7F800000> : vector<16xf32>
    %124 = vector.multi_reduction <minimumf>, %123, %cst_25 [1] : vector<16x16xf32> to vector<16xf32>
    %125 = vector.shape_cast %124 : vector<16xf32> to vector<16x1xf32>
    %126 = vector.broadcast %125 : vector<16x1xf32> to vector<16x16xf32>
    %127 = arith.cmpf oeq, %123, %126 : vector<16x16xf32>
    %c1073741824_i32_26 = arith.constant 1073741824 : i32
    %128 = vector.shape_cast %43 : vector<1x16xi32> to vector<1x16xi32>
    %129 = vector.broadcast %128 : vector<1x16xi32> to vector<16x16xi32>
    %130 = vector.broadcast %c1073741824_i32_26 : i32 to vector<16x16xi32>
    %131 = arith.select %127, %129, %130 : vector<16x16xi1>, vector<16x16xi32>
    %cst_27 = arith.constant dense<2147483647> : vector<16xi32>
    %132 = vector.multi_reduction <minsi>, %131, %cst_27 [1] : vector<16x16xi32> to vector<16xi32>
    %133 = vector.shape_cast %132 : vector<16xi32> to vector<16x1xi32>
    %134 = vector.broadcast %43 : vector<1x16xi32> to vector<16x16xi32>
    %135 = vector.broadcast %133 : vector<16x1xi32> to vector<16x16xi32>
    %136 = arith.cmpi eq, %134, %135 : vector<16x16xi32>
    %137 = arith.andi %127, %136 : vector<16x16xi1>
    %cst_28 = arith.constant 0x7F800000 : f32
    %138 = vector.broadcast %cst_28 : f32 to vector<16x16xf32>
    %139 = arith.select %137, %138, %123 : vector<16x16xi1>, vector<16x16xf32>
    %cst_29 = arith.constant dense<0x7F800000> : vector<16xf32>
    %140 = vector.multi_reduction <minimumf>, %139, %cst_29 [1] : vector<16x16xf32> to vector<16xf32>
    %141 = vector.shape_cast %140 : vector<16xf32> to vector<16x1xf32>
    %142 = vector.broadcast %141 : vector<16x1xf32> to vector<16x16xf32>
    %143 = arith.cmpf oeq, %139, %142 : vector<16x16xf32>
    %c1073741824_i32_30 = arith.constant 1073741824 : i32
    %144 = vector.shape_cast %43 : vector<1x16xi32> to vector<1x16xi32>
    %145 = vector.broadcast %144 : vector<1x16xi32> to vector<16x16xi32>
    %146 = vector.broadcast %c1073741824_i32_30 : i32 to vector<16x16xi32>
    %147 = arith.select %143, %145, %146 : vector<16x16xi1>, vector<16x16xi32>
    %cst_31 = arith.constant dense<2147483647> : vector<16xi32>
    %148 = vector.multi_reduction <minsi>, %147, %cst_31 [1] : vector<16x16xi32> to vector<16xi32>
    %149 = vector.shape_cast %148 : vector<16xi32> to vector<16x1xi32>
    %150 = vector.broadcast %43 : vector<1x16xi32> to vector<16x16xi32>
    %151 = vector.broadcast %149 : vector<16x1xi32> to vector<16x16xi32>
    %152 = arith.cmpi eq, %150, %151 : vector<16x16xi32>
    %153 = arith.andi %143, %152 : vector<16x16xi1>
    %cst_32 = arith.constant 0x7F800000 : f32
    %154 = vector.broadcast %cst_32 : f32 to vector<16x16xf32>
    %155 = arith.select %153, %154, %139 : vector<16x16xi1>, vector<16x16xf32>
    %cst_33 = arith.constant dense<0x7F800000> : vector<16xf32>
    %156 = vector.multi_reduction <minimumf>, %155, %cst_33 [1] : vector<16x16xf32> to vector<16xf32>
    %157 = vector.shape_cast %156 : vector<16xf32> to vector<16x1xf32>
    %158 = vector.broadcast %157 : vector<16x1xf32> to vector<16x16xf32>
    %159 = arith.cmpf oeq, %155, %158 : vector<16x16xf32>
    %c1073741824_i32_34 = arith.constant 1073741824 : i32
    %160 = vector.shape_cast %43 : vector<1x16xi32> to vector<1x16xi32>
    %161 = vector.broadcast %160 : vector<1x16xi32> to vector<16x16xi32>
    %162 = vector.broadcast %c1073741824_i32_34 : i32 to vector<16x16xi32>
    %163 = arith.select %159, %161, %162 : vector<16x16xi1>, vector<16x16xi32>
    %cst_35 = arith.constant dense<2147483647> : vector<16xi32>
    %164 = vector.multi_reduction <minsi>, %163, %cst_35 [1] : vector<16x16xi32> to vector<16xi32>
    %165 = vector.shape_cast %164 : vector<16xi32> to vector<16x1xi32>
    %166 = vector.broadcast %43 : vector<1x16xi32> to vector<16x16xi32>
    %167 = vector.broadcast %165 : vector<16x1xi32> to vector<16x16xi32>
    %168 = arith.cmpi eq, %166, %167 : vector<16x16xi32>
    %169 = arith.andi %159, %168 : vector<16x16xi1>
    %cst_36 = arith.constant 0x7F800000 : f32
    %170 = vector.broadcast %cst_36 : f32 to vector<16x16xf32>
    %171 = arith.select %169, %170, %155 : vector<16x16xi1>, vector<16x16xf32>
    %cst_37 = arith.constant dense<0x7F800000> : vector<16xf32>
    %172 = vector.multi_reduction <minimumf>, %171, %cst_37 [1] : vector<16x16xf32> to vector<16xf32>
    %173 = vector.shape_cast %172 : vector<16xf32> to vector<16x1xf32>
    %174 = vector.broadcast %173 : vector<16x1xf32> to vector<16x16xf32>
    %175 = arith.cmpf oeq, %171, %174 : vector<16x16xf32>
    %c1073741824_i32_38 = arith.constant 1073741824 : i32
    %176 = vector.shape_cast %43 : vector<1x16xi32> to vector<1x16xi32>
    %177 = vector.broadcast %176 : vector<1x16xi32> to vector<16x16xi32>
    %178 = vector.broadcast %c1073741824_i32_38 : i32 to vector<16x16xi32>
    %179 = arith.select %175, %177, %178 : vector<16x16xi1>, vector<16x16xi32>
    %cst_39 = arith.constant dense<2147483647> : vector<16xi32>
    %180 = vector.multi_reduction <minsi>, %179, %cst_39 [1] : vector<16x16xi32> to vector<16xi32>
    %181 = vector.shape_cast %180 : vector<16xi32> to vector<16x1xi32>
    %182 = vector.broadcast %43 : vector<1x16xi32> to vector<16x16xi32>
    %183 = vector.broadcast %181 : vector<16x1xi32> to vector<16x16xi32>
    %184 = arith.cmpi eq, %182, %183 : vector<16x16xi32>
    %185 = arith.andi %175, %184 : vector<16x16xi1>
    %cst_40 = arith.constant 0x7F800000 : f32
    %186 = vector.broadcast %cst_40 : f32 to vector<16x16xf32>
    %187 = arith.select %185, %186, %171 : vector<16x16xi1>, vector<16x16xf32>
    %cst_41 = arith.constant dense<0x7F800000> : vector<16xf32>
    %188 = vector.multi_reduction <minimumf>, %187, %cst_41 [1] : vector<16x16xf32> to vector<16xf32>
    %189 = vector.shape_cast %188 : vector<16xf32> to vector<16x1xf32>
    %190 = vector.broadcast %189 : vector<16x1xf32> to vector<16x16xf32>
    %191 = arith.cmpf oeq, %187, %190 : vector<16x16xf32>
    %c1073741824_i32_42 = arith.constant 1073741824 : i32
    %192 = vector.shape_cast %43 : vector<1x16xi32> to vector<1x16xi32>
    %193 = vector.broadcast %192 : vector<1x16xi32> to vector<16x16xi32>
    %194 = vector.broadcast %c1073741824_i32_42 : i32 to vector<16x16xi32>
    %195 = arith.select %191, %193, %194 : vector<16x16xi1>, vector<16x16xi32>
    %cst_43 = arith.constant dense<2147483647> : vector<16xi32>
    %196 = vector.multi_reduction <minsi>, %195, %cst_43 [1] : vector<16x16xi32> to vector<16xi32>
    %197 = vector.shape_cast %196 : vector<16xi32> to vector<16x1xi32>
    %198 = tpu.concatenate %45, %61, %77, %93, %109, %125, %141, %157, %173, %189 in 1 : vector<16x1xf32>, vector<16x1xf32>, vector<16x1xf32>, vector<16x1xf32>, vector<16x1xf32>, vector<16x1xf32>, vector<16x1xf32>, vector<16x1xf32>, vector<16x1xf32>, vector<16x1xf32> -> vector<16x10xf32>
    %199 = tpu.concatenate %53, %69, %85, %101, %117, %133, %149, %165, %181, %197 in 1 : vector<16x1xi32>, vector<16x1xi32>, vector<16x1xi32>, vector<16x1xi32>, vector<16x1xi32>, vector<16x1xi32>, vector<16x1xi32>, vector<16x1xi32>, vector<16x1xi32>, vector<16x1xi32> -> vector<16x10xi32>
    %c0_44 = arith.constant 0 : index
    %c0_45 = arith.constant 0 : index
    %200 = vector.load %arg6[%c0_44, %c0_45] : memref<16x10xf32, #tpu.memory_space<vmem>>, vector<16x10xf32>
    %201 = tpu.concatenate %200, %198 in 1 : vector<16x10xf32>, vector<16x10xf32> -> vector<16x20xf32>
    %c0_46 = arith.constant 0 : index
    %c0_47 = arith.constant 0 : index
    %202 = vector.load %arg7[%c0_46, %c0_47] : memref<16x10xi32, #tpu.memory_space<vmem>>, vector<16x10xi32>
    %203 = tpu.concatenate %202, %199 in 1 : vector<16x10xi32>, vector<16x10xi32> -> vector<16x20xi32>
    %cst_48 = arith.constant dense<0x7F800000> : vector<16xf32>
    %204 = vector.multi_reduction <minimumf>, %201, %cst_48 [1] : vector<16x20xf32> to vector<16xf32>
    %205 = vector.shape_cast %204 : vector<16xf32> to vector<16x1xf32>
    %206 = vector.broadcast %205 : vector<16x1xf32> to vector<16x20xf32>
    %207 = arith.cmpf oeq, %201, %206 : vector<16x20xf32>
    %c1073741824_i32_49 = arith.constant 1073741824 : i32
    %208 = vector.broadcast %c1073741824_i32_49 : i32 to vector<16x20xi32>
    %209 = arith.select %207, %203, %208 : vector<16x20xi1>, vector<16x20xi32>
    %cst_50 = arith.constant dense<2147483647> : vector<16xi32>
    %210 = vector.multi_reduction <minsi>, %209, %cst_50 [1] : vector<16x20xi32> to vector<16xi32>
    %211 = vector.shape_cast %210 : vector<16xi32> to vector<16x1xi32>
    %212 = vector.broadcast %211 : vector<16x1xi32> to vector<16x20xi32>
    %213 = arith.cmpi eq, %203, %212 : vector<16x20xi32>
    %214 = arith.andi %207, %213 : vector<16x20xi1>
    %cst_51 = arith.constant 0x7F800000 : f32
    %215 = vector.broadcast %cst_51 : f32 to vector<16x20xf32>
    %216 = arith.select %214, %215, %201 : vector<16x20xi1>, vector<16x20xf32>
    %cst_52 = arith.constant dense<0x7F800000> : vector<16xf32>
    %217 = vector.multi_reduction <minimumf>, %216, %cst_52 [1] : vector<16x20xf32> to vector<16xf32>
    %218 = vector.shape_cast %217 : vector<16xf32> to vector<16x1xf32>
    %219 = vector.broadcast %218 : vector<16x1xf32> to vector<16x20xf32>
    %220 = arith.cmpf oeq, %216, %219 : vector<16x20xf32>
    %c1073741824_i32_53 = arith.constant 1073741824 : i32
    %221 = vector.broadcast %c1073741824_i32_53 : i32 to vector<16x20xi32>
    %222 = arith.select %220, %203, %221 : vector<16x20xi1>, vector<16x20xi32>
    %cst_54 = arith.constant dense<2147483647> : vector<16xi32>
    %223 = vector.multi_reduction <minsi>, %222, %cst_54 [1] : vector<16x20xi32> to vector<16xi32>
    %224 = vector.shape_cast %223 : vector<16xi32> to vector<16x1xi32>
    %225 = vector.broadcast %224 : vector<16x1xi32> to vector<16x20xi32>
    %226 = arith.cmpi eq, %203, %225 : vector<16x20xi32>
    %227 = arith.andi %220, %226 : vector<16x20xi1>
    %cst_55 = arith.constant 0x7F800000 : f32
    %228 = vector.broadcast %cst_55 : f32 to vector<16x20xf32>
    %229 = arith.select %227, %228, %216 : vector<16x20xi1>, vector<16x20xf32>
    %cst_56 = arith.constant dense<0x7F800000> : vector<16xf32>
    %230 = vector.multi_reduction <minimumf>, %229, %cst_56 [1] : vector<16x20xf32> to vector<16xf32>
    %231 = vector.shape_cast %230 : vector<16xf32> to vector<16x1xf32>
    %232 = vector.broadcast %231 : vector<16x1xf32> to vector<16x20xf32>
    %233 = arith.cmpf oeq, %229, %232 : vector<16x20xf32>
    %c1073741824_i32_57 = arith.constant 1073741824 : i32
    %234 = vector.broadcast %c1073741824_i32_57 : i32 to vector<16x20xi32>
    %235 = arith.select %233, %203, %234 : vector<16x20xi1>, vector<16x20xi32>
    %cst_58 = arith.constant dense<2147483647> : vector<16xi32>
    %236 = vector.multi_reduction <minsi>, %235, %cst_58 [1] : vector<16x20xi32> to vector<16xi32>
    %237 = vector.shape_cast %236 : vector<16xi32> to vector<16x1xi32>
    %238 = vector.broadcast %237 : vector<16x1xi32> to vector<16x20xi32>
    %239 = arith.cmpi eq, %203, %238 : vector<16x20xi32>
    %240 = arith.andi %233, %239 : vector<16x20xi1>
    %cst_59 = arith.constant 0x7F800000 : f32
    %241 = vector.broadcast %cst_59 : f32 to vector<16x20xf32>
    %242 = arith.select %240, %241, %229 : vector<16x20xi1>, vector<16x20xf32>
    %cst_60 = arith.constant dense<0x7F800000> : vector<16xf32>
    %243 = vector.multi_reduction <minimumf>, %242, %cst_60 [1] : vector<16x20xf32> to vector<16xf32>
    %244 = vector.shape_cast %243 : vector<16xf32> to vector<16x1xf32>
    %245 = vector.broadcast %244 : vector<16x1xf32> to vector<16x20xf32>
    %246 = arith.cmpf oeq, %242, %245 : vector<16x20xf32>
    %c1073741824_i32_61 = arith.constant 1073741824 : i32
    %247 = vector.broadcast %c1073741824_i32_61 : i32 to vector<16x20xi32>
    %248 = arith.select %246, %203, %247 : vector<16x20xi1>, vector<16x20xi32>
    %cst_62 = arith.constant dense<2147483647> : vector<16xi32>
    %249 = vector.multi_reduction <minsi>, %248, %cst_62 [1] : vector<16x20xi32> to vector<16xi32>
    %250 = vector.shape_cast %249 : vector<16xi32> to vector<16x1xi32>
    %251 = vector.broadcast %250 : vector<16x1xi32> to vector<16x20xi32>
    %252 = arith.cmpi eq, %203, %251 : vector<16x20xi32>
    %253 = arith.andi %246, %252 : vector<16x20xi1>
    %cst_63 = arith.constant 0x7F800000 : f32
    %254 = vector.broadcast %cst_63 : f32 to vector<16x20xf32>
    %255 = arith.select %253, %254, %242 : vector<16x20xi1>, vector<16x20xf32>
    %cst_64 = arith.constant dense<0x7F800000> : vector<16xf32>
    %256 = vector.multi_reduction <minimumf>, %255, %cst_64 [1] : vector<16x20xf32> to vector<16xf32>
    %257 = vector.shape_cast %256 : vector<16xf32> to vector<16x1xf32>
    %258 = vector.broadcast %257 : vector<16x1xf32> to vector<16x20xf32>
    %259 = arith.cmpf oeq, %255, %258 : vector<16x20xf32>
    %c1073741824_i32_65 = arith.constant 1073741824 : i32
    %260 = vector.broadcast %c1073741824_i32_65 : i32 to vector<16x20xi32>
    %261 = arith.select %259, %203, %260 : vector<16x20xi1>, vector<16x20xi32>
    %cst_66 = arith.constant dense<2147483647> : vector<16xi32>
    %262 = vector.multi_reduction <minsi>, %261, %cst_66 [1] : vector<16x20xi32> to vector<16xi32>
    %263 = vector.shape_cast %262 : vector<16xi32> to vector<16x1xi32>
    %264 = vector.broadcast %263 : vector<16x1xi32> to vector<16x20xi32>
    %265 = arith.cmpi eq, %203, %264 : vector<16x20xi32>
    %266 = arith.andi %259, %265 : vector<16x20xi1>
    %cst_67 = arith.constant 0x7F800000 : f32
    %267 = vector.broadcast %cst_67 : f32 to vector<16x20xf32>
    %268 = arith.select %266, %267, %255 : vector<16x20xi1>, vector<16x20xf32>
    %cst_68 = arith.constant dense<0x7F800000> : vector<16xf32>
    %269 = vector.multi_reduction <minimumf>, %268, %cst_68 [1] : vector<16x20xf32> to vector<16xf32>
    %270 = vector.shape_cast %269 : vector<16xf32> to vector<16x1xf32>
    %271 = vector.broadcast %270 : vector<16x1xf32> to vector<16x20xf32>
    %272 = arith.cmpf oeq, %268, %271 : vector<16x20xf32>
    %c1073741824_i32_69 = arith.constant 1073741824 : i32
    %273 = vector.broadcast %c1073741824_i32_69 : i32 to vector<16x20xi32>
    %274 = arith.select %272, %203, %273 : vector<16x20xi1>, vector<16x20xi32>
    %cst_70 = arith.constant dense<2147483647> : vector<16xi32>
    %275 = vector.multi_reduction <minsi>, %274, %cst_70 [1] : vector<16x20xi32> to vector<16xi32>
    %276 = vector.shape_cast %275 : vector<16xi32> to vector<16x1xi32>
    %277 = vector.broadcast %276 : vector<16x1xi32> to vector<16x20xi32>
    %278 = arith.cmpi eq, %203, %277 : vector<16x20xi32>
    %279 = arith.andi %272, %278 : vector<16x20xi1>
    %cst_71 = arith.constant 0x7F800000 : f32
    %280 = vector.broadcast %cst_71 : f32 to vector<16x20xf32>
    %281 = arith.select %279, %280, %268 : vector<16x20xi1>, vector<16x20xf32>
    %cst_72 = arith.constant dense<0x7F800000> : vector<16xf32>
    %282 = vector.multi_reduction <minimumf>, %281, %cst_72 [1] : vector<16x20xf32> to vector<16xf32>
    %283 = vector.shape_cast %282 : vector<16xf32> to vector<16x1xf32>
    %284 = vector.broadcast %283 : vector<16x1xf32> to vector<16x20xf32>
    %285 = arith.cmpf oeq, %281, %284 : vector<16x20xf32>
    %c1073741824_i32_73 = arith.constant 1073741824 : i32
    %286 = vector.broadcast %c1073741824_i32_73 : i32 to vector<16x20xi32>
    %287 = arith.select %285, %203, %286 : vector<16x20xi1>, vector<16x20xi32>
    %cst_74 = arith.constant dense<2147483647> : vector<16xi32>
    %288 = vector.multi_reduction <minsi>, %287, %cst_74 [1] : vector<16x20xi32> to vector<16xi32>
    %289 = vector.shape_cast %288 : vector<16xi32> to vector<16x1xi32>
    %290 = vector.broadcast %289 : vector<16x1xi32> to vector<16x20xi32>
    %291 = arith.cmpi eq, %203, %290 : vector<16x20xi32>
    %292 = arith.andi %285, %291 : vector<16x20xi1>
    %cst_75 = arith.constant 0x7F800000 : f32
    %293 = vector.broadcast %cst_75 : f32 to vector<16x20xf32>
    %294 = arith.select %292, %293, %281 : vector<16x20xi1>, vector<16x20xf32>
    %cst_76 = arith.constant dense<0x7F800000> : vector<16xf32>
    %295 = vector.multi_reduction <minimumf>, %294, %cst_76 [1] : vector<16x20xf32> to vector<16xf32>
    %296 = vector.shape_cast %295 : vector<16xf32> to vector<16x1xf32>
    %297 = vector.broadcast %296 : vector<16x1xf32> to vector<16x20xf32>
    %298 = arith.cmpf oeq, %294, %297 : vector<16x20xf32>
    %c1073741824_i32_77 = arith.constant 1073741824 : i32
    %299 = vector.broadcast %c1073741824_i32_77 : i32 to vector<16x20xi32>
    %300 = arith.select %298, %203, %299 : vector<16x20xi1>, vector<16x20xi32>
    %cst_78 = arith.constant dense<2147483647> : vector<16xi32>
    %301 = vector.multi_reduction <minsi>, %300, %cst_78 [1] : vector<16x20xi32> to vector<16xi32>
    %302 = vector.shape_cast %301 : vector<16xi32> to vector<16x1xi32>
    %303 = vector.broadcast %302 : vector<16x1xi32> to vector<16x20xi32>
    %304 = arith.cmpi eq, %203, %303 : vector<16x20xi32>
    %305 = arith.andi %298, %304 : vector<16x20xi1>
    %cst_79 = arith.constant 0x7F800000 : f32
    %306 = vector.broadcast %cst_79 : f32 to vector<16x20xf32>
    %307 = arith.select %305, %306, %294 : vector<16x20xi1>, vector<16x20xf32>
    %cst_80 = arith.constant dense<0x7F800000> : vector<16xf32>
    %308 = vector.multi_reduction <minimumf>, %307, %cst_80 [1] : vector<16x20xf32> to vector<16xf32>
    %309 = vector.shape_cast %308 : vector<16xf32> to vector<16x1xf32>
    %310 = vector.broadcast %309 : vector<16x1xf32> to vector<16x20xf32>
    %311 = arith.cmpf oeq, %307, %310 : vector<16x20xf32>
    %c1073741824_i32_81 = arith.constant 1073741824 : i32
    %312 = vector.broadcast %c1073741824_i32_81 : i32 to vector<16x20xi32>
    %313 = arith.select %311, %203, %312 : vector<16x20xi1>, vector<16x20xi32>
    %cst_82 = arith.constant dense<2147483647> : vector<16xi32>
    %314 = vector.multi_reduction <minsi>, %313, %cst_82 [1] : vector<16x20xi32> to vector<16xi32>
    %315 = vector.shape_cast %314 : vector<16xi32> to vector<16x1xi32>
    %316 = vector.broadcast %315 : vector<16x1xi32> to vector<16x20xi32>
    %317 = arith.cmpi eq, %203, %316 : vector<16x20xi32>
    %318 = arith.andi %311, %317 : vector<16x20xi1>
    %cst_83 = arith.constant 0x7F800000 : f32
    %319 = vector.broadcast %cst_83 : f32 to vector<16x20xf32>
    %320 = arith.select %318, %319, %307 : vector<16x20xi1>, vector<16x20xf32>
    %cst_84 = arith.constant dense<0x7F800000> : vector<16xf32>
    %321 = vector.multi_reduction <minimumf>, %320, %cst_84 [1] : vector<16x20xf32> to vector<16xf32>
    %322 = vector.shape_cast %321 : vector<16xf32> to vector<16x1xf32>
    %323 = vector.broadcast %322 : vector<16x1xf32> to vector<16x20xf32>
    %324 = arith.cmpf oeq, %320, %323 : vector<16x20xf32>
    %c1073741824_i32_85 = arith.constant 1073741824 : i32
    %325 = vector.broadcast %c1073741824_i32_85 : i32 to vector<16x20xi32>
    %326 = arith.select %324, %203, %325 : vector<16x20xi1>, vector<16x20xi32>
    %cst_86 = arith.constant dense<2147483647> : vector<16xi32>
    %327 = vector.multi_reduction <minsi>, %326, %cst_86 [1] : vector<16x20xi32> to vector<16xi32>
    %328 = vector.shape_cast %327 : vector<16xi32> to vector<16x1xi32>
    %329 = tpu.concatenate %205, %218, %231, %244, %257, %270, %283, %296, %309, %322 in 1 : vector<16x1xf32>, vector<16x1xf32>, vector<16x1xf32>, vector<16x1xf32>, vector<16x1xf32>, vector<16x1xf32>, vector<16x1xf32>, vector<16x1xf32>, vector<16x1xf32>, vector<16x1xf32> -> vector<16x10xf32>
    %c0_87 = arith.constant 0 : index
    %c0_88 = arith.constant 0 : index
    %330 = vector.load %arg6[%c0_87, %c0_88] : memref<16x10xf32, #tpu.memory_space<vmem>>, vector<16x10xf32>
    tpu.vector_store %arg6[%c0_87, %c0_88], %329 {strides = array<i32>} : memref<16x10xf32, #tpu.memory_space<vmem>>, vector<16x10xf32>,
    %331 = tpu.concatenate %211, %224, %237, %250, %263, %276, %289, %302, %315, %328 in 1 : vector<16x1xi32>, vector<16x1xi32>, vector<16x1xi32>, vector<16x1xi32>, vector<16x1xi32>, vector<16x1xi32>, vector<16x1xi32>, vector<16x1xi32>, vector<16x1xi32>, vector<16x1xi32> -> vector<16x10xi32>
    %c0_89 = arith.constant 0 : index
    %c0_90 = arith.constant 0 : index
    %332 = vector.load %arg7[%c0_89, %c0_90] : memref<16x10xi32, #tpu.memory_space<vmem>>, vector<16x10xi32>
    tpu.vector_store %arg7[%c0_89, %c0_90], %331 {strides = array<i32>} : memref<16x10xi32, #tpu.memory_space<vmem>>, vector<16x10xi32>,
    %c0_i32_91 = arith.constant 0 : i32
    %333 = arith.cmpi eq, %arg2, %c0_i32_91 : i32
    %334 = arith.extui %333 : i1 to i32
    %c0_i32_92 = arith.constant 0 : i32
    %335 = arith.cmpi ne, %334, %c0_i32_92 : i32
    scf.if %335 {
      %c0_93 = arith.constant 0 : index
      %c0_94 = arith.constant 0 : index
      %336 = vector.load %arg7[%c0_93, %c0_94] : memref<16x10xi32, #tpu.memory_space<vmem>>, vector<16x10xi32>
      %c0_95 = arith.constant 0 : index
      %c0_96 = arith.constant 0 : index
      %c0_97 = arith.constant 0 : index
      %337 = vector.load %arg5[%c0_95, %c0_96, %c0_97] : memref<1x16x10xi32, #tpu.memory_space<vmem>>, vector<1x16x10xi32>
      %338 = vector.shape_cast %337 : vector<1x16x10xi32> to vector<16x10xi32>
      %339 = vector.shape_cast %336 : vector<16x10xi32> to vector<1x16x10xi32>
      tpu.vector_store %arg5[%c0_95, %c0_96, %c0_97], %339 {strides = array<i32>} : memref<1x16x10xi32, #tpu.memory_space<vmem>>, vector<1x16x10xi32>,
    } else {
    }
    return
  }
  func.func @transform_0(%arg0: i32, %arg1: i32, %arg2: i32) -> (i32, i32, i32) {
    %c0_i32 = arith.constant 0 : i32
    %c0_i32_0 = arith.constant 0 : i32
    return %arg0, %arg1, %c0_i32 : i32, i32, i32
  }
  func.func @transform_1(%arg0: i32, %arg1: i32, %arg2: i32) -> (i32, i32, i32) {
    %c0_i32 = arith.constant 0 : i32
    %c0_i32_0 = arith.constant 0 : i32
    return %arg0, %c0_i32, %arg2 : i32, i32, i32
  }
  func.func @transform_2(%arg0: i32, %arg1: i32, %arg2: i32) -> (i32, i32, i32) {
    %c0_i32 = arith.constant 0 : i32
    %c0_i32_0 = arith.constant 0 : i32
    return %arg0, %arg1, %c0_i32 : i32, i32, i32
  }
}

module attributes {stable_mosaic.version = 11 : i64} {
  func.func @kernel(%arg0: i32, %arg1: i32, %arg2: memref<1x3x9x16xf32, #tpu.memory_space<vmem>>, %arg3: memref<1x6x16xf32, #tpu.memory_space<vmem>>) attributes {dimension_semantics = [#tpu.dimension_semantics<parallel>, #tpu.dimension_semantics<parallel>], iteration_bounds = array<i64: 2, 1>, scalar_prefetch = 0 : i64, scratch_operands = 0 : i64, tpu.core_type = #tpu.core_type<tc>, window_params = [{transform_indices = @transform_0, window_bounds = array<i64: 1, 3, 9, 16>}, {transform_indices = @transform_1, window_bounds = array<i64: 1, 6, 16>}]} {
    %c0 = arith.constant 0 : index
    %c0_0 = arith.constant 0 : index
    %c0_1 = arith.constant 0 : index
    %c0_2 = arith.constant 0 : index
    %0 = vector.load %arg2[%c0, %c0_0, %c0_1, %c0_2] : memref<1x3x9x16xf32, #tpu.memory_space<vmem>>, vector<1x3x9x16xf32>
    %1 = vector.shape_cast %0 : vector<1x3x9x16xf32> to vector<3x9x16xf32>
    %2 = vector.extract_strided_slice %1 {offsets = [0, 0, 0], sizes = [1, 9, 16], strides = [1, 1, 1]} : vector<3x9x16xf32> to vector<1x9x16xf32>
    %3 = vector.shape_cast %2 : vector<1x9x16xf32> to vector<9x16xf32>
    %4 = vector.extract_strided_slice %1 {offsets = [1, 0, 0], sizes = [1, 9, 16], strides = [1, 1, 1]} : vector<3x9x16xf32> to vector<1x9x16xf32>
    %5 = vector.shape_cast %4 : vector<1x9x16xf32> to vector<9x16xf32>
    %6 = vector.extract_strided_slice %1 {offsets = [2, 0, 0], sizes = [1, 9, 16], strides = [1, 1, 1]} : vector<3x9x16xf32> to vector<1x9x16xf32>
    %7 = vector.shape_cast %6 : vector<1x9x16xf32> to vector<9x16xf32>
    %8 = vector.extract_strided_slice %3 {offsets = [1, 0], sizes = [8, 16], strides = [1, 1]} : vector<9x16xf32> to vector<8x16xf32>
    %9 = vector.extract_strided_slice %3 {offsets = [0, 0], sizes = [1, 16], strides = [1, 1]} : vector<9x16xf32> to vector<1x16xf32>
    %10 = tpu.concatenate %8, %9 in 0 : vector<8x16xf32>, vector<1x16xf32> -> vector<9x16xf32>
    %11 = vector.extract_strided_slice %5 {offsets = [1, 0], sizes = [8, 16], strides = [1, 1]} : vector<9x16xf32> to vector<8x16xf32>
    %12 = vector.extract_strided_slice %5 {offsets = [0, 0], sizes = [1, 16], strides = [1, 1]} : vector<9x16xf32> to vector<1x16xf32>
    %13 = tpu.concatenate %11, %12 in 0 : vector<8x16xf32>, vector<1x16xf32> -> vector<9x16xf32>
    %14 = vector.extract_strided_slice %7 {offsets = [1, 0], sizes = [8, 16], strides = [1, 1]} : vector<9x16xf32> to vector<8x16xf32>
    %15 = vector.extract_strided_slice %7 {offsets = [0, 0], sizes = [1, 16], strides = [1, 1]} : vector<9x16xf32> to vector<1x16xf32>
    %16 = tpu.concatenate %14, %15 in 0 : vector<8x16xf32>, vector<1x16xf32> -> vector<9x16xf32>
    %cst = arith.constant dense<0.000000e+00> : vector<16xf32>
    %17 = vector.multi_reduction <add>, %3, %cst [0] : vector<9x16xf32> to vector<16xf32>
    %18 = vector.shape_cast %17 : vector<16xf32> to vector<1x16xf32>
    %cst_3 = arith.constant 0.111111112 : f32
    %19 = vector.broadcast %cst_3 : f32 to vector<1x16xf32>
    %20 = arith.mulf %18, %19 : vector<1x16xf32>
    %cst_4 = arith.constant dense<0.000000e+00> : vector<16xf32>
    %21 = vector.multi_reduction <add>, %5, %cst_4 [0] : vector<9x16xf32> to vector<16xf32>
    %22 = vector.shape_cast %21 : vector<16xf32> to vector<1x16xf32>
    %cst_5 = arith.constant 0.111111112 : f32
    %23 = vector.broadcast %cst_5 : f32 to vector<1x16xf32>
    %24 = arith.mulf %22, %23 : vector<1x16xf32>
    %cst_6 = arith.constant dense<0.000000e+00> : vector<16xf32>
    %25 = vector.multi_reduction <add>, %7, %cst_6 [0] : vector<9x16xf32> to vector<16xf32>
    %26 = vector.shape_cast %25 : vector<16xf32> to vector<1x16xf32>
    %cst_7 = arith.constant 0.111111112 : f32
    %27 = vector.broadcast %cst_7 : f32 to vector<1x16xf32>
    %28 = arith.mulf %26, %27 : vector<1x16xf32>
    %29 = arith.mulf %5, %16 : vector<9x16xf32>
    %30 = arith.mulf %7, %13 : vector<9x16xf32>
    %31 = arith.subf %29, %30 : vector<9x16xf32>
    %32 = arith.mulf %7, %10 : vector<9x16xf32>
    %33 = arith.mulf %3, %16 : vector<9x16xf32>
    %34 = arith.subf %32, %33 : vector<9x16xf32>
    %35 = arith.mulf %3, %13 : vector<9x16xf32>
    %36 = arith.mulf %5, %10 : vector<9x16xf32>
    %37 = arith.subf %35, %36 : vector<9x16xf32>
    %38 = arith.mulf %31, %31 : vector<9x16xf32>
    %39 = arith.mulf %34, %34 : vector<9x16xf32>
    %40 = arith.addf %38, %39 : vector<9x16xf32>
    %41 = arith.mulf %37, %37 : vector<9x16xf32>
    %42 = arith.addf %40, %41 : vector<9x16xf32>
    %43 = math.sqrt %42 : vector<9x16xf32>
    %cst_8 = arith.constant 9.99999997E-7 : f32
    %44 = vector.broadcast %cst_8 : f32 to vector<9x16xf32>
    %45 = arith.addf %43, %44 : vector<9x16xf32>
    %cst_9 = arith.constant 1.000000e+00 : f32
    %46 = vector.broadcast %cst_9 : f32 to vector<9x16xf32>
    %47 = arith.divf %46, %45 : vector<9x16xf32>
    %48 = arith.addf %7, %16 : vector<9x16xf32>
    %cst_10 = arith.constant 0.000000e+00 : f32
    %49 = vector.broadcast %cst_10 : f32 to vector<9x16xf32>
    %50 = arith.cmpf ogt, %48, %49 : vector<9x16xf32>
    %cst_11 = arith.constant 0.000000e+00 : f32
    %51 = vector.broadcast %cst_11 : f32 to vector<9x16xf32>
    %52 = arith.subf %51, %47 : vector<9x16xf32>
    %53 = arith.select %50, %47, %52 : vector<9x16xi1>, vector<9x16xf32>
    %54 = arith.mulf %31, %53 : vector<9x16xf32>
    %55 = arith.mulf %34, %53 : vector<9x16xf32>
    %56 = arith.mulf %37, %53 : vector<9x16xf32>
    %cst_12 = arith.constant dense<0.000000e+00> : vector<16xf32>
    %57 = vector.multi_reduction <add>, %54, %cst_12 [0] : vector<9x16xf32> to vector<16xf32>
    %58 = vector.shape_cast %57 : vector<16xf32> to vector<1x16xf32>
    %cst_13 = arith.constant 0.111111112 : f32
    %59 = vector.broadcast %cst_13 : f32 to vector<1x16xf32>
    %60 = arith.mulf %58, %59 : vector<1x16xf32>
    %cst_14 = arith.constant dense<0.000000e+00> : vector<16xf32>
    %61 = vector.multi_reduction <add>, %55, %cst_14 [0] : vector<9x16xf32> to vector<16xf32>
    %62 = vector.shape_cast %61 : vector<16xf32> to vector<1x16xf32>
    %cst_15 = arith.constant 0.111111112 : f32
    %63 = vector.broadcast %cst_15 : f32 to vector<1x16xf32>
    %64 = arith.mulf %62, %63 : vector<1x16xf32>
    %cst_16 = arith.constant dense<0.000000e+00> : vector<16xf32>
    %65 = vector.multi_reduction <add>, %56, %cst_16 [0] : vector<9x16xf32> to vector<16xf32>
    %66 = vector.shape_cast %65 : vector<16xf32> to vector<1x16xf32>
    %cst_17 = arith.constant 0.111111112 : f32
    %67 = vector.broadcast %cst_17 : f32 to vector<1x16xf32>
    %68 = arith.mulf %66, %67 : vector<1x16xf32>
    %69 = tpu.concatenate %20, %24, %28, %60, %64, %68 in 0 : vector<1x16xf32>, vector<1x16xf32>, vector<1x16xf32>, vector<1x16xf32>, vector<1x16xf32>, vector<1x16xf32> -> vector<6x16xf32>
    %c0_18 = arith.constant 0 : index
    %c0_19 = arith.constant 0 : index
    %c0_20 = arith.constant 0 : index
    %70 = vector.load %arg3[%c0_18, %c0_19, %c0_20] : memref<1x6x16xf32, #tpu.memory_space<vmem>>, vector<1x6x16xf32>
    %71 = vector.shape_cast %70 : vector<1x6x16xf32> to vector<6x16xf32>
    %72 = vector.shape_cast %69 : vector<6x16xf32> to vector<1x6x16xf32>
    tpu.vector_store %arg3[%c0_18, %c0_19, %c0_20], %72 {strides = array<i32>} : memref<1x6x16xf32, #tpu.memory_space<vmem>>, vector<1x6x16xf32>,
    return
  }
  func.func @transform_0(%arg0: i32, %arg1: i32) -> (i32, i32, i32, i32) {
    %c0_i32 = arith.constant 0 : i32
    %c0_i32_0 = arith.constant 0 : i32
    %c0_i32_1 = arith.constant 0 : i32
    return %arg0, %c0_i32, %c0_i32_0, %arg1 : i32, i32, i32, i32
  }
  func.func @transform_1(%arg0: i32, %arg1: i32) -> (i32, i32, i32) {
    %c0_i32 = arith.constant 0 : i32
    %c0_i32_0 = arith.constant 0 : i32
    return %arg0, %c0_i32, %arg1 : i32, i32, i32
  }
}

</mosaic_0001>

<llo_original>
// kernel: geometric_extractor.2
$region0: #{geometric_extractor.2}
  #allocation0 [shape = 'u32[]', space=smem, size = 0x4, offset = 0x4, fixed_abs, tag = 'smem constant byte address 0x4 - core index']
  #allocation1 [shape = 'u32[144,128]{1,0:T(1,128)}', space=vmem, size = 0x12000, scoped, tag = 'internal scratch']
  #allocation2 [shape = 'f32[16,10]{1,0:T(8,128)}', space=vmem, size = 0x2000, scoped, tag = 'scratch operand']
  #allocation3 [shape = 's32[16,10]{1,0:T(8,128)}', space=vmem, size = 0x2000, scoped, tag = 'scratch operand']
  %s0 = inlined_call_operand.vmem [shape: f32[2,16,3], index: 0, kind: input, shape index: {}]
  %s1 = inlined_call_operand.vmem [shape: f32[2,3,16], index: 1, kind: input, shape index: {}]
  %s2 = inlined_call_operand.vmem [shape: s32[2,16,10], index: 2, kind: output, shape index: {}]
  %s3 = sld [smem:[#allocation0]]
  $region49: #{geometric_extractor.2} parent=0
    _
  %s5 = ssub.s32 1, %s3
  %s6 = scalar_select 0, %s5, %s3
  loop: start=0, step=1, limit=4
  $region2: #{geometric_extractor.2} parent=0 // loop_pre_header
    _
  $region3: #{geometric_extractor.2} parent=0 // loop_header
    %s8 = sphi 0, %s12
    %p9 = scmp.ge.s32.totalorder %s8, 4
    %s15 = sphi 0, %s34
    %s16 = sphi 0, %s30
    %s17 = sphi 0, %s26
    %s18 = sphi 0, %s15
    %s19 = sphi 0, %s16
    %s20 = sphi 0, %s17
    %s21 = sphi 0, %s18
    %s22 = sphi 0, %s19
    %s23 = sphi 0, %s20
    %s39 = sphi 0, %s41
    %s42 = sphi 0, %s39
    %s43 = sphi 0, %s42
    %s59 = sphi 0, %s43
    %s67 = sphi 0, %s69
    %s70 = sphi 0, %s67
    %s71 = sphi 0, %s70
    %s87 = sphi 0, %s71
    %s95 = sphi 0, %s97
    %s98 = sphi 0, %s95
    %s99 = sphi 0, %s98
    %s115 = sphi 0, %s99
  $region4: #{geometric_extractor.2} parent=0 // loop_header_branch
    %11 = sbr.rel (%p9) target = $region8
  $region5: #{geometric_extractor.2} parent=0 // loop_body
    %s13 = ssub.s32 %s8, 1
    %s14 = ssub.s32 %s8, 2
    %s24 = sadd.s32 1, %s17
    %p25 = scmp.ge.s32.totalorder %s24, 1
    %s26 = scalar_select %p25, 0, %s24
    %s27 = sadd.s32 1, %s16
    %s28 = scalar_select %p25, %s27, %s16
    %p29 = scmp.ge.s32.totalorder %s28, 1
    %s30 = scalar_select %p29, 0, %s28
    %s31 = sadd.s32 1, %s15
    %s32 = scalar_select %p29, %s31, %s15
    %p33 = scmp.ge.s32.totalorder %s32, 2
    %s34 = scalar_select %p33, 0, %s32
    %s35 = ssub.s32 %s15, %s34
    %s36 = ssub.s32 %s16, %s30
    %s37 = sor.u32 %s35, %s36
    %p38 = scmp.eq.s32.totalorder %s37, 0
    %s40 = sadd.s32 %s39, 1
    %s41 = scalar_select %p38, %s39, %s40
    %p44 = pneg %p38
    %p45 = scmp.eq.s32.totalorder %s8, 1
    %p46 = por %p44, %p45
    %p47 = scmp.ne.s32.totalorder %s39, %s42
    %p48 = scmp.eq.s32.totalorder %s8, 0
    %p49 = por %p47, %p48
    %p50 = scmp.ne.s32.totalorder %s39, %s42
    %p51 = scmp.eq.s32.totalorder %s13, 1
    %p52 = por %p50, %p51
    %p53 = scmp.ne.s32.totalorder %s42, %s43
    %p54 = scmp.eq.s32.totalorder %s13, 0
    %p55 = por %p53, %p54
    %p56 = scmp.ne.s32.totalorder %s42, %s43
    %p57 = scmp.eq.s32.totalorder %s14, 1
    %p58 = por %p56, %p57
    %p60 = scmp.ne.s32.totalorder %s43, %s59
    %p61 = scmp.eq.s32.totalorder %s14, 0
    %p62 = por %p60, %p61
    %s63 = ssub.s32 %s15, %s34
    %s64 = ssub.s32 %s17, %s26
    %s65 = sor.u32 %s63, %s64
    %p66 = scmp.eq.s32.totalorder %s65, 0
    %s68 = sadd.s32 %s67, 1
    %s69 = scalar_select %p66, %s67, %s68
    %p72 = pneg %p66
    %p73 = scmp.eq.s32.totalorder %s8, 1
    %p74 = por %p72, %p73
    %p75 = scmp.ne.s32.totalorder %s67, %s70
    %p76 = scmp.eq.s32.totalorder %s8, 0
    %p77 = por %p75, %p76
    %p78 = scmp.ne.s32.totalorder %s67, %s70
    %p79 = scmp.eq.s32.totalorder %s13, 1
    %p80 = por %p78, %p79
    %p81 = scmp.ne.s32.totalorder %s70, %s71
    %p82 = scmp.eq.s32.totalorder %s13, 0
    %p83 = por %p81, %p82
    %p84 = scmp.ne.s32.totalorder %s70, %s71
    %p85 = scmp.eq.s32.totalorder %s14, 1
    %p86 = por %p84, %p85
    %p88 = scmp.ne.s32.totalorder %s71, %s87
    %p89 = scmp.eq.s32.totalorder %s14, 0
    %p90 = por %p88, %p89
    %s91 = ssub.s32 %s15, %s34
    %s92 = ssub.s32 %s16, %s30
    %s93 = sor.u32 %s91, %s92
    %p94 = scmp.eq.s32.totalorder %s93, 0
    %s96 = sadd.s32 %s95, 1
    %s97 = scalar_select %p94, %s95, %s96
    %p100 = pneg %p94
    %p101 = scmp.eq.s32.totalorder %s8, 1
    %p102 = por %p100, %p101
    %p103 = scmp.ne.s32.totalorder %s95, %s98
    %p104 = scmp.eq.s32.totalorder %s8, 0
    %p105 = por %p103, %p104
    %p106 = scmp.ne.s32.totalorder %s95, %s98
    %p107 = scmp.eq.s32.totalorder %s13, 1
    %p108 = por %p106, %p107
    %p109 = scmp.ne.s32.totalorder %s98, %s99
    %p110 = scmp.eq.s32.totalorder %s13, 0
    %p111 = por %p109, %p110
    %p112 = scmp.ne.s32.totalorder %s98, %s99
    %p113 = scmp.eq.s32.totalorder %s14, 1
    %p114 = por %p112, %p113
    %p116 = scmp.ne.s32.totalorder %s99, %s115
    %p117 = scmp.eq.s32.totalorder %s14, 0
    %p118 = por %p116, %p117
    %p119 = scmp.le.s32.totalorder 1, %s8
    %p120 = scmp.lt.s32.totalorder %s8, 3
    %p121 = pnand %p119, %p120
    %p122 = pneg %p121
    // Predicated region
    $region9: #{geometric_extractor.2} parent=5 // pred_check
      _
    $region10: #{geometric_extractor.2} parent=5 // pred_check_branch
      %124 = sbr.rel (%p121) target = $region12
    $region11: #{geometric_extractor.2} parent=5 // pred_region
      %s125 = ssub.s32 %s8, 1
    $region12: #{geometric_extractor.2} parent=5 // pred_fallthru
      _
    %p126 = scmp.lt.s32.totalorder %s8, 2
    // Predicated region
    $region13: #{geometric_extractor.2} parent=5 // pred_check
      %p127 = pneg %p126
    $region14: #{geometric_extractor.2} parent=5 // pred_check_branch
      %129 = sbr.rel (%p127) target = $region16
    $region15: #{geometric_extractor.2} parent=5 // pred_region
      // Predicated region
      $region17: #{geometric_extractor.2} parent=15 // pred_check
        %p130 = pneg %p49
      $region18: #{geometric_extractor.2} parent=15 // pred_check_branch
        %132 = sbr.rel (%p130) target = $region20
      $region19: #{geometric_extractor.2} parent=15 // pred_region
        %s133 = smul.u32 2, %s16
        %p134 = scmp.lt.s32.totalorder %s15, 1
        %s135 = scalar_select %p134, %s15, 1
        %p136 = scmp.lt.s32.totalorder %s133, 1
        %s137 = scalar_select %p136, %s133, 1
        %s138 = smul.addr %s135, 2
        %s139 = sadd.s32 %s137, %s138
        %s140 = smul.addr %s139, 8
        %s141 = scalar_lea.vmem %s0, %s140
        %s142 = smul.u32 2, %s16
      $region20: #{geometric_extractor.2} parent=15 // pred_fallthru
        _
      // Predicated region
      $region21: #{geometric_extractor.2} parent=15 // pred_check
        %p143 = pneg %p77
      $region22: #{geometric_extractor.2} parent=15 // pred_check_branch
        %145 = sbr.rel (%p143) target = $region24
      $region23: #{geometric_extractor.2} parent=15 // pred_region
        %p146 = scmp.lt.s32.totalorder %s15, 1
        %s147 = scalar_select %p146, %s15, 1
        %p148 = scmp.lt.s32.totalorder %s17, 0
        %s149 = scalar_select %p148, %s17, 0
        %s150 = sadd.s32 %s149, %s147
        %s151 = smul.addr %s150, 4
        %s152 = scalar_lea.vmem %s1, %s151
      $region24: #{geometric_extractor.2} parent=15 // pred_fallthru
        _
    $region16: #{geometric_extractor.2} parent=5 // pred_fallthru
      _
    %p153 = scmp.le.s32.totalorder 1, %s8
    %p154 = scmp.lt.s32.totalorder %s8, 3
    %p155 = pnand %p153, %p154
    %p156 = pneg %p155
    // Predicated region
    $region25: #{geometric_extractor.2} parent=5 // pred_check
      _
    $region26: #{geometric_extractor.2} parent=5 // pred_check_branch
      %158 = sbr.rel (%p155) target = $region28
    $region27: #{geometric_extractor.2} parent=5 // pred_region
      %s159 = ssub.s32 %s8, 1
      %s160 = smul.u32 2, %s19
      %p161 = scmp.lt.s32.totalorder %s18, 1
      %s162 = scalar_select %p161, %s18, 1
      %p163 = scmp.lt.s32.totalorder %s160, 1
      %s164 = scalar_select %p163, %s160, 1
      %s165 = smul.addr %s162, 2
      %s166 = sadd.s32 %s164, %s165
      %s167 = smul.addr %s166, 8
      %s168 = scalar_lea.vmem %s0, %s167
      %p169 = pneg %p55
      %p170 = pneg %p52
      %p171 = scmp.lt.s32.totalorder %s18, 1
      %s172 = scalar_select %p171, %s18, 1
      %p173 = scmp.lt.s32.totalorder %s20, 0
      %s174 = scalar_select %p173, %s20, 0
      %s175 = sadd.s32 %s174, %s172
      %s176 = smul.addr %s175, 4
      %s177 = scalar_lea.vmem %s1, %s176
      %p178 = pneg %p83
      %p179 = pneg %p80
      %p180 = pneg %p111
      %p181 = pneg %p108
      %s182 = smul.u32 2, %s19
      %p183 = scmp.lt.s32.totalorder %s18, 1
      %s184 = scalar_select %p183, %s18, 1
      %p185 = scmp.lt.s32.totalorder %s182, 1
      %s186 = scalar_select %p185, %s182, 1
      %s187 = smul.addr %s184, 2
      %s188 = sadd.s32 %s186, %s187
      %s189 = smul.addr %s188, 8
      %s190 = scalar_lea.vmem %s2, %s189
      %s191 = smul.u32 2, %s19
      %p192 = scmp.lt.s32.totalorder %s18, 1
      %s193 = scalar_select %p192, %s18, 1
      %p194 = scmp.lt.s32.totalorder %s191, 1
      %s195 = scalar_select %p194, %s191, 1
      %s196 = smul.addr %s193, 2
      %s197 = sadd.s32 %s195, %s196
      %s198 = smul.addr %s197, 8
      %s199 = scalar_lea.vmem %s0, %s198
      %s200 = smul.u32 2, %s19
      %p201 = scmp.lt.s32.totalorder %s18, 1
      %s202 = scalar_select %p201, %s18, 1
      %p203 = scmp.lt.s32.totalorder %s20, 0
      %s204 = scalar_select %p203, %s20, 0
      %s205 = sadd.s32 %s204, %s202
      %s206 = smul.addr %s205, 4
      %s207 = scalar_lea.vmem %s1, %s206
      %s208 = smul.u32 2, %s19
      %p209 = scmp.lt.s32.totalorder %s18, 1
      %s210 = scalar_select %p209, %s18, 1
      %p211 = scmp.lt.s32.totalorder %s208, 1
      %s212 = scalar_select %p211, %s208, 1
      %s213 = smul.addr %s210, 2
      %s214 = sadd.s32 %s212, %s213
      %s215 = smul.addr %s214, 8
      %s216 = scalar_lea.vmem %s2, %s215
      %s217 = smul.u32 2, %s19
      %p218 = scmp.eq.s32.totalorder %s20, 0
      // Predicated region
      $region29: #{geometric_extractor.2} parent=27 // pred_check
        %p219 = pneg %p218
      $region30: #{geometric_extractor.2} parent=27 // pred_check_branch
        %221 = sbr.rel (%p219) target = $region32
      $region31: #{geometric_extractor.2} parent=27 // pred_region
        %vm222 = vcmask 80896
        %223 = vst.msk [vmem:[#allocation2] sm:$0xff] %vm222, inf
        %224 = vst.msk [vmem:[#allocation2 + $0x8] sm:$0xff] %vm222, inf
        %225 = vst.msk [vmem:[#allocation3] sm:$0xff] %vm222, 0
        %226 = vst.msk [vmem:[#allocation3 + $0x8] sm:$0xff] %vm222, 0
      $region32: #{geometric_extractor.2} parent=27 // pred_fallthru
        _
      %v227 = vld [vmem:[%s199] sm:$0xff]
      %v228 = vld [vmem:[%s199 + $0x8] sm:$0xff]
      %v229 = vld [vmem:[%s207] sm:$0x7]
      %231 = vset.pattern.permute.xlu0 0
      %232 = vperm.xlu0 %231, %v227
      %v233 = vpop.permute.xlu0 %232
      %236 = vset.pattern.permute.xlu0 0
      %237 = vperm.xlu0 %236, %v228
      %v238 = vpop.permute.xlu0 %237
      %v240 = vlaneseq
      %v241 = vshrl.u32 %v240, 7
      %v242 = vsub.s32 0, %v241
      %v243 = vrot.slane %v229, %v242
      %v244 = vmul.f32 %v233, %v243
      %v245 = vmul.f32 %v238, %v243
      %246 = vset.pattern.permute.xlu0 1
      %247 = vperm.xlu0 %246, %v227
      %v248 = vpop.permute.xlu0 %247
      %250 = vset.pattern.permute.xlu0 1
      %251 = vperm.xlu0 %250, %v228
      %v252 = vpop.permute.xlu0 %251
      %v254 = vlaneseq
      %v255 = vshrl.u32 %v254, 7
      %v256 = vsub.s32 1, %v255
      %v257 = vrot.slane %v229, %v256
      %v258 = vmul.f32 %v248, %v257
      %v259 = vmul.f32 %v252, %v257
      %v260 = vadd.f32 %v244, %v258
      %v261 = vadd.f32 %v245, %v259
      %262 = vset.pattern.permute.xlu0 2
      %263 = vperm.xlu0 %262, %v227
      %v264 = vpop.permute.xlu0 %263
      %266 = vset.pattern.permute.xlu0 2
      %267 = vperm.xlu0 %266, %v228
      %v268 = vpop.permute.xlu0 %267
      %v270 = vlaneseq
      %v271 = vshrl.u32 %v270, 7
      %v272 = vsub.s32 2, %v271
      %v273 = vrot.slane %v229, %v272
      %v274 = vmul.f32 %v264, %v273
      %v275 = vmul.f32 %v268, %v273
      %v276 = vadd.f32 %v260, %v274
      %v277 = vadd.f32 %v261, %v275
      %v278 = vmul.f32 %v227, %v227
      %v279 = vmul.f32 %v228, %v228
      %282 = vrot.lane.b32.xlu0 %v278, 127
      %v283 = vpop.permute.xlu0 %282
      %284 = vrot.lane.b32.xlu0 %v279, 127
      %v285 = vpop.permute.xlu0 %284
      %v288 = vadd.f32 %v278, %v283
      %v289 = vadd.f32 %v279, %v285
      %290 = vrot.lane.b32.xlu0 %v278, 126
      %v291 = vpop.permute.xlu0 %290
      %292 = vrot.lane.b32.xlu0 %v279, 126
      %v293 = vpop.permute.xlu0 %292
      %v296 = vadd.f32 %v288, %v291
      %v297 = vadd.f32 %v289, %v293
      %v298 = vmul.f32 %v229, %v229
      %v300 = vrot.slane %v298, 1
      %v302 = vadd.f32 %v298, %v300
      %v303 = vrot.slane %v298, 2
      %v305 = vadd.f32 %v302, %v303
      %307 = vset.pattern.permute.xlu0 0
      %308 = vperm.xlu0 %307, %v296
      %v309 = vpop.permute.xlu0 %308
      %312 = vset.pattern.permute.xlu0 0
      %313 = vperm.xlu0 %312, %v297
      %v314 = vpop.permute.xlu0 %313
      %v316 = vlaneseq
      %v317 = vshrl.u32 %v316, 7
      %v318 = vsub.s32 0, %v317
      %v319 = vrot.slane %v305, %v318
      %v320 = vadd.f32 %v309, %v319
      %v321 = vadd.f32 %v314, %v319
      %v322 = vmul.f32 %v276, 2.0
      %v323 = vmul.f32 %v277, 2.0
      %v324 = vsub.f32 %v320, %v322
      %v325 = vsub.f32 %v321, %v323
      %v326 = vlaneseq
      %v327 = vand.u32 %v326, 127
      %s328 = smul.u32 %s20, 16
      %v329 = vstv %s328
      %v330 = vadd.s32 %v327, %v329
      %vm331 = vcmask 130048
      %v332 = vsel %vm331, %v324, inf
      %333 = vmin.xlane.f32.xlu0 %v332
      %v334 = vpop.xlane.xlu0 %333
      %v335 = vsel %vm331, %v325, inf
      %336 = vmin.xlane.f32.xlu0 %v335
      %v337 = vpop.xlane.xlu0 %336
      %vm338 = vcmp.eq.f32.partialorder %v324, %v334
      %vm339 = vcmp.eq.f32.partialorder %v325, %v337
      %v340 = vsel %vm338, %v330, 1073741824
      %v341 = vsel %vm339, %v330, 1073741824
      %v342 = vsel %vm331, %v340, 2147483647
      %v343 = vand.u32 %v342, 65535
      %v344 = vshra.s32 %v342, 16
      %v345 = vcvt.s32.f32 %v343
      %v346 = vcvt.s32.f32 %v344
      %347 = vmin.xlane.f32.xlu0 %v346
      %v348 = vpop.xlane.xlu0 %347
      %vm349 = vcmp.eq.f32.partialorder %v346, %v348
      %v350 = vsel %vm349, %v345, inf
      %351 = vmin.xlane.f32.xlu0 %v350
      %v352 = vpop.xlane.xlu0 %351
      %v353 = vcvt.f32.s32 %v352
      %v354 = vcvt.f32.s32 %v348
      %v355 = vshll.u32 %v354, 16
      %v356 = vadd.s32 %v355, %v353
      %v357 = vsel %vm331, %v341, 2147483647
      %v358 = vand.u32 %v357, 65535
      %v359 = vshra.s32 %v357, 16
      %v360 = vcvt.s32.f32 %v358
      %v361 = vcvt.s32.f32 %v359
      %362 = vmin.xlane.f32.xlu0 %v361
      %v363 = vpop.xlane.xlu0 %362
      %vm364 = vcmp.eq.f32.partialorder %v361, %v363
      %v365 = vsel %vm364, %v360, inf
      %366 = vmin.xlane.f32.xlu0 %v365
      %v367 = vpop.xlane.xlu0 %366
      %v368 = vcvt.f32.s32 %v367
      %v369 = vcvt.f32.s32 %v363
      %v370 = vshll.u32 %v369, 16
      %v371 = vadd.s32 %v370, %v368
      %vm372 = vcmp.eq.s32.totalorder %v330, %v356
      %vm373 = vcmp.eq.s32.totalorder %v330, %v371
      %vm374 = vmand %vm338, %vm372
      %vm375 = vmand %vm339, %vm373
      %v376 = vsel %vm374, inf, %v324
      %v377 = vsel %vm375, inf, %v325
      %v378 = vsel %vm331, %v376, inf
      %379 = vmin.xlane.f32.xlu0 %v378
      %v380 = vpop.xlane.xlu0 %379
      %v381 = vsel %vm331, %v377, inf
      %382 = vmin.xlane.f32.xlu0 %v381
      %v383 = vpop.xlane.xlu0 %382
      %vm384 = vcmp.eq.f32.partialorder %v376, %v380
      %vm385 = vcmp.eq.f32.partialorder %v377, %v383
      %v386 = vsel %vm384, %v330, 1073741824
      %v387 = vsel %vm385, %v330, 1073741824
      %v388 = vsel %vm331, %v386, 2147483647
      %v389 = vand.u32 %v388, 65535
      %v390 = vshra.s32 %v388, 16
      %v391 = vcvt.s32.f32 %v389
      %v392 = vcvt.s32.f32 %v390
      %393 = vmin.xlane.f32.xlu0 %v392
      %v394 = vpop.xlane.xlu0 %393
      %vm395 = vcmp.eq.f32.partialorder %v392, %v394
      %v396 = vsel %vm395, %v391, inf
      %397 = vmin.xlane.f32.xlu0 %v396
      %v398 = vpop.xlane.xlu0 %397
      %v399 = vcvt.f32.s32 %v398
      %v400 = vcvt.f32.s32 %v394
      %v401 = vshll.u32 %v400, 16
      %v402 = vadd.s32 %v401, %v399
      %v403 = vsel %vm331, %v387, 2147483647
      %v404 = vand.u32 %v403, 65535
      %v405 = vshra.s32 %v403, 16
      %v406 = vcvt.s32.f32 %v404
      %v407 = vcvt.s32.f32 %v405
      %408 = vmin.xlane.f32.xlu0 %v407
      %v409 = vpop.xlane.xlu0 %408
      %vm410 = vcmp.eq.f32.partialorder %v407, %v409
      %v411 = vsel %vm410, %v406, inf
      %412 = vmin.xlane.f32.xlu0 %v411
      %v413 = vpop.xlane.xlu0 %412
      %v414 = vcvt.f32.s32 %v413
      %v415 = vcvt.f32.s32 %v409
      %v416 = vshll.u32 %v415, 16
      %v417 = vadd.s32 %v416, %v414
      %vm418 = vcmp.eq.s32.totalorder %v330, %v402
      %vm419 = vcmp.eq.s32.totalorder %v330, %v417
      %vm420 = vmand %vm384, %vm418
      %vm421 = vmand %vm385, %vm419
      %v422 = vsel %vm420, inf, %v376
      %v423 = vsel %vm421, inf, %v377
      %v424 = vsel %vm331, %v422, inf
      %425 = vmin.xlane.f32.xlu0 %v424
      %v426 = vpop.xlane.xlu0 %425
      %v427 = vsel %vm331, %v423, inf
      %428 = vmin.xlane.f32.xlu0 %v427
      %v429 = vpop.xlane.xlu0 %428
      %vm430 = vcmp.eq.f32.partialorder %v422, %v426
      %vm431 = vcmp.eq.f32.partialorder %v423, %v429
      %v432 = vsel %vm430, %v330, 1073741824
      %v433 = vsel %vm431, %v330, 1073741824
      %v434 = vsel %vm331, %v432, 2147483647
      %v435 = vand.u32 %v434, 65535
      %v436 = vshra.s32 %v434, 16
      %v437 = vcvt.s32.f32 %v435
      %v438 = vcvt.s32.f32 %v436
      %439 = vmin.xlane.f32.xlu0 %v438
      %v440 = vpop.xlane.xlu0 %439
      %vm441 = vcmp.eq.f32.partialorder %v438, %v440
      %v442 = vsel %vm441, %v437, inf
      %443 = vmin.xlane.f32.xlu0 %v442
      %v444 = vpop.xlane.xlu0 %443
      %v445 = vcvt.f32.s32 %v444
      %v446 = vcvt.f32.s32 %v440
      %v447 = vshll.u32 %v446, 16
      %v448 = vadd.s32 %v447, %v445
      %v449 = vsel %vm331, %v433, 2147483647
      %v450 = vand.u32 %v449, 65535
      %v451 = vshra.s32 %v449, 16
      %v452 = vcvt.s32.f32 %v450
      %v453 = vcvt.s32.f32 %v451
      %454 = vmin.xlane.f32.xlu0 %v453
      %v455 = vpop.xlane.xlu0 %454
      %vm456 = vcmp.eq.f32.partialorder %v453, %v455
      %v457 = vsel %vm456, %v452, inf
      %458 = vmin.xlane.f32.xlu0 %v457
      %v459 = vpop.xlane.xlu0 %458
      %v460 = vcvt.f32.s32 %v459
      %v461 = vcvt.f32.s32 %v455
      %v462 = vshll.u32 %v461, 16
      %v463 = vadd.s32 %v462, %v460
      %vm464 = vcmp.eq.s32.totalorder %v330, %v448
      %vm465 = vcmp.eq.s32.totalorder %v330, %v463
      %vm466 = vmand %vm430, %vm464
      %vm467 = vmand %vm431, %vm465
      %v468 = vsel %vm466, inf, %v422
      %v469 = vsel %vm467, inf, %v423
      %v470 = vsel %vm331, %v468, inf
      %471 = vmin.xlane.f32.xlu0 %v470
      %v472 = vpop.xlane.xlu0 %471
      %v473 = vsel %vm331, %v469, inf
      %474 = vmin.xlane.f32.xlu0 %v473
      %v475 = vpop.xlane.xlu0 %474
      %vm476 = vcmp.eq.f32.partialorder %v468, %v472
      %vm477 = vcmp.eq.f32.partialorder %v469, %v475
      %v478 = vsel %vm476, %v330, 1073741824
      %v479 = vsel %vm477, %v330, 1073741824
      %v480 = vsel %vm331, %v478, 2147483647
      %v481 = vand.u32 %v480, 65535
      %v482 = vshra.s32 %v480, 16
      %v483 = vcvt.s32.f32 %v481
      %v484 = vcvt.s32.f32 %v482
      %485 = vmin.xlane.f32.xlu0 %v484
      %v486 = vpop.xlane.xlu0 %485
      %vm487 = vcmp.eq.f32.partialorder %v484, %v486
      %v488 = vsel %vm487, %v483, inf
      %489 = vmin.xlane.f32.xlu0 %v488
      %v490 = vpop.xlane.xlu0 %489
      %v491 = vcvt.f32.s32 %v490
      %v492 = vcvt.f32.s32 %v486
      %v493 = vshll.u32 %v492, 16
      %v494 = vadd.s32 %v493, %v491
      %v495 = vsel %vm331, %v479, 2147483647
      %v496 = vand.u32 %v495, 65535
      %v497 = vshra.s32 %v495, 16
      %v498 = vcvt.s32.f32 %v496
      %v499 = vcvt.s32.f32 %v497
      %500 = vmin.xlane.f32.xlu0 %v499
      %v501 = vpop.xlane.xlu0 %500
      %vm502 = vcmp.eq.f32.partialorder %v499, %v501
      %v503 = vsel %vm502, %v498, inf
      %504 = vmin.xlane.f32.xlu0 %v503
      %v505 = vpop.xlane.xlu0 %504
      %v506 = vcvt.f32.s32 %v505
      %v507 = vcvt.f32.s32 %v501
      %v508 = vshll.u32 %v507, 16
      %v509 = vadd.s32 %v508, %v506
      %vm510 = vcmp.eq.s32.totalorder %v330, %v494
      %vm511 = vcmp.eq.s32.totalorder %v330, %v509
      %vm512 = vmand %vm476, %vm510
      %vm513 = vmand %vm477, %vm511
      %v514 = vsel %vm512, inf, %v468
      %v515 = vsel %vm513, inf, %v469
      %v516 = vsel %vm331, %v514, inf
      %517 = vmin.xlane.f32.xlu0 %v516
      %v518 = vpop.xlane.xlu0 %517
      %v519 = vsel %vm331, %v515, inf
      %520 = vmin.xlane.f32.xlu0 %v519
      %v521 = vpop.xlane.xlu0 %520
      %vm522 = vcmp.eq.f32.partialorder %v514, %v518
      %vm523 = vcmp.eq.f32.partialorder %v515, %v521
      %v524 = vsel %vm522, %v330, 1073741824
      %v525 = vsel %vm523, %v330, 1073741824
      %v526 = vsel %vm331, %v524, 2147483647
      %v527 = vand.u32 %v526, 65535
      %v528 = vshra.s32 %v526, 16
      %v529 = vcvt.s32.f32 %v527
      %v530 = vcvt.s32.f32 %v528
      %531 = vmin.xlane.f32.xlu0 %v530
      %v532 = vpop.xlane.xlu0 %531
      %vm533 = vcmp.eq.f32.partialorder %v530, %v532
      %v534 = vsel %vm533, %v529, inf
      %535 = vmin.xlane.f32.xlu0 %v534
      %v536 = vpop.xlane.xlu0 %535
      %v537 = vcvt.f32.s32 %v536
      %v538 = vcvt.f32.s32 %v532
      %v539 = vshll.u32 %v538, 16
      %v540 = vadd.s32 %v539, %v537
      %v541 = vsel %vm331, %v525, 2147483647
      %v542 = vand.u32 %v541, 65535
      %v543 = vshra.s32 %v541, 16
      %v544 = vcvt.s32.f32 %v542
      %v545 = vcvt.s32.f32 %v543
      %546 = vmin.xlane.f32.xlu0 %v545
      %v547 = vpop.xlane.xlu0 %546
      %vm548 = vcmp.eq.f32.partialorder %v545, %v547
      %v549 = vsel %vm548, %v544, inf
      %550 = vmin.xlane.f32.xlu0 %v549
      %v551 = vpop.xlane.xlu0 %550
      %v552 = vcvt.f32.s32 %v551
      %v553 = vcvt.f32.s32 %v547
      %v554 = vshll.u32 %v553, 16
      %v555 = vadd.s32 %v554, %v552
      %vm556 = vcmp.eq.s32.totalorder %v330, %v540
      %vm557 = vcmp.eq.s32.totalorder %v330, %v555
      %vm558 = vmand %vm522, %vm556
      %vm559 = vmand %vm523, %vm557
      %v560 = vsel %vm558, inf, %v514
      %v561 = vsel %vm559, inf, %v515
      %v562 = vsel %vm331, %v560, inf
      %563 = vmin.xlane.f32.xlu0 %v562
      %v564 = vpop.xlane.xlu0 %563
      %v565 = vsel %vm331, %v561, inf
      %566 = vmin.xlane.f32.xlu0 %v565
      %v567 = vpop.xlane.xlu0 %566
      %vm568 = vcmp.eq.f32.partialorder %v560, %v564
      %vm569 = vcmp.eq.f32.partialorder %v561, %v567
      %v570 = vsel %vm568, %v330, 1073741824
      %v571 = vsel %vm569, %v330, 1073741824
      %v572 = vsel %vm331, %v570, 2147483647
      %v573 = vand.u32 %v572, 65535
      %v574 = vshra.s32 %v572, 16
      %v575 = vcvt.s32.f32 %v573
      %v576 = vcvt.s32.f32 %v574
      %577 = vmin.xlane.f32.xlu0 %v576
      %v578 = vpop.xlane.xlu0 %577
      %vm579 = vcmp.eq.f32.partialorder %v576, %v578
      %v580 = vsel %vm579, %v575, inf
      %581 = vmin.xlane.f32.xlu0 %v580
      %v582 = vpop.xlane.xlu0 %581
      %v583 = vcvt.f32.s32 %v582
      %v584 = vcvt.f32.s32 %v578
      %v585 = vshll.u32 %v584, 16
      %v586 = vadd.s32 %v585, %v583
      %v587 = vsel %vm331, %v571, 2147483647
      %v588 = vand.u32 %v587, 65535
      %v589 = vshra.s32 %v587, 16
      %v590 = vcvt.s32.f32 %v588
      %v591 = vcvt.s32.f32 %v589
      %592 = vmin.xlane.f32.xlu0 %v591
      %v593 = vpop.xlane.xlu0 %592
      %vm594 = vcmp.eq.f32.partialorder %v591, %v593
      %v595 = vsel %vm594, %v590, inf
      %596 = vmin.xlane.f32.xlu0 %v595
      %v597 = vpop.xlane.xlu0 %596
      %v598 = vcvt.f32.s32 %v597
      %v599 = vcvt.f32.s32 %v593
      %v600 = vshll.u32 %v599, 16
      %v601 = vadd.s32 %v600, %v598
      %vm602 = vcmp.eq.s32.totalorder %v330, %v586
      %vm603 = vcmp.eq.s32.totalorder %v330, %v601
      %vm604 = vmand %vm568, %vm602
      %vm605 = vmand %vm569, %vm603
      %v606 = vsel %vm604, inf, %v560
      %v607 = vsel %vm605, inf, %v561
      %v608 = vsel %vm331, %v606, inf
      %609 = vmin.xlane.f32.xlu0 %v608
      %v610 = vpop.xlane.xlu0 %609
      %v611 = vsel %vm331, %v607, inf
      %612 = vmin.xlane.f32.xlu0 %v611
      %v613 = vpop.xlane.xlu0 %612
      %vm614 = vcmp.eq.f32.partialorder %v606, %v610
      %vm615 = vcmp.eq.f32.partialorder %v607, %v613
      %v616 = vsel %vm614, %v330, 1073741824
      %v617 = vsel %vm615, %v330, 1073741824
      %v618 = vsel %vm331, %v616, 2147483647
      %v619 = vand.u32 %v618, 65535
      %v620 = vshra.s32 %v618, 16
      %v621 = vcvt.s32.f32 %v619
      %v622 = vcvt.s32.f32 %v620
      %623 = vmin.xlane.f32.xlu0 %v622
      %v624 = vpop.xlane.xlu0 %623
      %vm625 = vcmp.eq.f32.partialorder %v622, %v624
      %v626 = vsel %vm625, %v621, inf
      %627 = vmin.xlane.f32.xlu0 %v626
      %v628 = vpop.xlane.xlu0 %627
      %v629 = vcvt.f32.s32 %v628
      %v630 = vcvt.f32.s32 %v624
      %v631 = vshll.u32 %v630, 16
      %v632 = vadd.s32 %v631, %v629
      %v633 = vsel %vm331, %v617, 2147483647
      %v634 = vand.u32 %v633, 65535
      %v635 = vshra.s32 %v633, 16
      %v636 = vcvt.s32.f32 %v634
      %v637 = vcvt.s32.f32 %v635
      %638 = vmin.xlane.f32.xlu0 %v637
      %v639 = vpop.xlane.xlu0 %638
      %vm640 = vcmp.eq.f32.partialorder %v637, %v639
      %v641 = vsel %vm640, %v636, inf
      %642 = vmin.xlane.f32.xlu0 %v641
      %v643 = vpop.xlane.xlu0 %642
      %v644 = vcvt.f32.s32 %v643
      %v645 = vcvt.f32.s32 %v639
      %v646 = vshll.u32 %v645, 16
      %v647 = vadd.s32 %v646, %v644
      %vm648 = vcmp.eq.s32.totalorder %v330, %v632
      %vm649 = vcmp.eq.s32.totalorder %v330, %v647
      %vm650 = vmand %vm614, %vm648
      %vm651 = vmand %vm615, %vm649
      %v652 = vsel %vm650, inf, %v606
      %v653 = vsel %vm651, inf, %v607
      %v654 = vsel %vm331, %v652, inf
      %655 = vmin.xlane.f32.xlu0 %v654
      %v656 = vpop.xlane.xlu0 %655
      %v657 = vsel %vm331, %v653, inf
      %658 = vmin.xlane.f32.xlu0 %v657
      %v659 = vpop.xlane.xlu0 %658
      %vm660 = vcmp.eq.f32.partialorder %v652, %v656
      %vm661 = vcmp.eq.f32.partialorder %v653, %v659
      %v662 = vsel %vm660, %v330, 1073741824
      %v663 = vsel %vm661, %v330, 1073741824
      %v664 = vsel %vm331, %v662, 2147483647
      %v665 = vand.u32 %v664, 65535
      %v666 = vshra.s32 %v664, 16
      %v667 = vcvt.s32.f32 %v665
      %v668 = vcvt.s32.f32 %v666
      %669 = vmin.xlane.f32.xlu0 %v668
      %v670 = vpop.xlane.xlu0 %669
      %vm671 = vcmp.eq.f32.partialorder %v668, %v670
      %v672 = vsel %vm671, %v667, inf
      %673 = vmin.xlane.f32.xlu0 %v672
      %v674 = vpop.xlane.xlu0 %673
      %v675 = vcvt.f32.s32 %v674
      %v676 = vcvt.f32.s32 %v670
      %v677 = vshll.u32 %v676, 16
      %v678 = vadd.s32 %v677, %v675
      %v679 = vsel %vm331, %v663, 2147483647
      %v680 = vand.u32 %v679, 65535
      %v681 = vshra.s32 %v679, 16
      %v682 = vcvt.s32.f32 %v680
      %v683 = vcvt.s32.f32 %v681
      %684 = vmin.xlane.f32.xlu0 %v683
      %v685 = vpop.xlane.xlu0 %684
      %vm686 = vcmp.eq.f32.partialorder %v683, %v685
      %v687 = vsel %vm686, %v682, inf
      %688 = vmin.xlane.f32.xlu0 %v687
      %v689 = vpop.xlane.xlu0 %688
      %v690 = vcvt.f32.s32 %v689
      %v691 = vcvt.f32.s32 %v685
      %v692 = vshll.u32 %v691, 16
      %v693 = vadd.s32 %v692, %v690
      %vm694 = vcmp.eq.s32.totalorder %v330, %v678
      %vm695 = vcmp.eq.s32.totalorder %v330, %v693
      %vm696 = vmand %vm660, %vm694
      %vm697 = vmand %vm661, %vm695
      %v698 = vsel %vm696, inf, %v652
      %v699 = vsel %vm697, inf, %v653
      %v700 = vsel %vm331, %v698, inf
      %701 = vmin.xlane.f32.xlu0 %v700
      %v702 = vpop.xlane.xlu0 %701
      %v703 = vsel %vm331, %v699, inf
      %704 = vmin.xlane.f32.xlu0 %v703
      %v705 = vpop.xlane.xlu0 %704
      %vm706 = vcmp.eq.f32.partialorder %v698, %v702
      %vm707 = vcmp.eq.f32.partialorder %v699, %v705
      %v708 = vsel %vm706, %v330, 1073741824
      %v709 = vsel %vm707, %v330, 1073741824
      %v710 = vsel %vm331, %v708, 2147483647
      %v711 = vand.u32 %v710, 65535
      %v712 = vshra.s32 %v710, 16
      %v713 = vcvt.s32.f32 %v711
      %v714 = vcvt.s32.f32 %v712
      %715 = vmin.xlane.f32.xlu0 %v714
      %v716 = vpop.xlane.xlu0 %715
      %vm717 = vcmp.eq.f32.partialorder %v714, %v716
      %v718 = vsel %vm717, %v713, inf
      %719 = vmin.xlane.f32.xlu0 %v718
      %v720 = vpop.xlane.xlu0 %719
      %v721 = vcvt.f32.s32 %v720
      %v722 = vcvt.f32.s32 %v716
      %v723 = vshll.u32 %v722, 16
      %v724 = vadd.s32 %v723, %v721
      %v725 = vsel %vm331, %v709, 2147483647
      %v726 = vand.u32 %v725, 65535
      %v727 = vshra.s32 %v725, 16
      %v728 = vcvt.s32.f32 %v726
      %v729 = vcvt.s32.f32 %v727
      %730 = vmin.xlane.f32.xlu0 %v729
      %v731 = vpop.xlane.xlu0 %730
      %vm732 = vcmp.eq.f32.partialorder %v729, %v731
      %v733 = vsel %vm732, %v728, inf
      %734 = vmin.xlane.f32.xlu0 %v733
      %v735 = vpop.xlane.xlu0 %734
      %v736 = vcvt.f32.s32 %v735
      %v737 = vcvt.f32.s32 %v731
      %v738 = vshll.u32 %v737, 16
      %v739 = vadd.s32 %v738, %v736
      %vm740 = vcmp.eq.s32.totalorder %v330, %v724
      %vm741 = vcmp.eq.s32.totalorder %v330, %v739
      %vm742 = vmand %vm706, %vm740
      %vm743 = vmand %vm707, %vm741
      %v744 = vsel %vm742, inf, %v698
      %v745 = vsel %vm743, inf, %v699
      %v746 = vsel %vm331, %v744, inf
      %747 = vmin.xlane.f32.xlu0 %v746
      %v748 = vpop.xlane.xlu0 %747
      %v749 = vsel %vm331, %v745, inf
      %750 = vmin.xlane.f32.xlu0 %v749
      %v751 = vpop.xlane.xlu0 %750
      %vm752 = vcmp.eq.f32.partialorder %v744, %v748
      %vm753 = vcmp.eq.f32.partialorder %v745, %v751
      %v754 = vsel %vm752, %v330, 1073741824
      %v755 = vsel %vm753, %v330, 1073741824
      %v756 = vsel %vm331, %v754, 2147483647
      %v757 = vand.u32 %v756, 65535
      %v758 = vshra.s32 %v756, 16
      %v759 = vcvt.s32.f32 %v757
      %v760 = vcvt.s32.f32 %v758
      %761 = vmin.xlane.f32.xlu0 %v760
      %v762 = vpop.xlane.xlu0 %761
      %vm763 = vcmp.eq.f32.partialorder %v760, %v762
      %v764 = vsel %vm763, %v759, inf
      %765 = vmin.xlane.f32.xlu0 %v764
      %v766 = vpop.xlane.xlu0 %765
      %v767 = vcvt.f32.s32 %v766
      %v768 = vcvt.f32.s32 %v762
      %v769 = vshll.u32 %v768, 16
      %v770 = vadd.s32 %v769, %v767
      %v771 = vsel %vm331, %v755, 2147483647
      %v772 = vand.u32 %v771, 65535
      %v773 = vshra.s32 %v771, 16
      %v774 = vcvt.s32.f32 %v772
      %v775 = vcvt.s32.f32 %v773
      %776 = vmin.xlane.f32.xlu0 %v775
      %v777 = vpop.xlane.xlu0 %776
      %vm778 = vcmp.eq.f32.partialorder %v775, %v777
      %v779 = vsel %vm778, %v774, inf
      %780 = vmin.xlane.f32.xlu0 %v779
      %v781 = vpop.xlane.xlu0 %780
      %v782 = vcvt.f32.s32 %v781
      %v783 = vcvt.f32.s32 %v777
      %v784 = vshll.u32 %v783, 16
      %v785 = vadd.s32 %v784, %v782
      %vm786 = vcmask 7168
      %v787 = vsel %vm786, %v334, %v380
      %v788 = vsel %vm786, %v337, %v383
      %vm789 = vcmask 15360
      %v790 = vsel %vm789, %v787, %v426
      %v791 = vsel %vm789, %v788, %v429
      %vm792 = vcmask 23552
      %v793 = vsel %vm792, %v790, %v472
      %v794 = vsel %vm792, %v791, %v475
      %vm795 = vcmask 31744
      %v796 = vsel %vm795, %v793, %v518
      %v797 = vsel %vm795, %v794, %v521
      %vm798 = vcmask 39936
      %v799 = vsel %vm798, %v796, %v564
      %v800 = vsel %vm798, %v797, %v567
      %vm801 = vcmask 48128
      %v802 = vsel %vm801, %v799, %v610
      %v803 = vsel %vm801, %v800, %v613
      %vm804 = vcmask 56320
      %v805 = vsel %vm804, %v802, %v656
      %v806 = vsel %vm804, %v803, %v659
      %vm807 = vcmask 64512
      %v808 = vsel %vm807, %v805, %v702
      %v809 = vsel %vm807, %v806, %v705
      %vm810 = vcmask 72704
      %v811 = vsel %vm810, %v808, %v748
      %v812 = vsel %vm810, %v809, %v751
      %v813 = vsel %vm786, %v356, %v402
      %v814 = vsel %vm786, %v371, %v417
      %v815 = vsel %vm789, %v813, %v448
      %v816 = vsel %vm789, %v814, %v463
      %v817 = vsel %vm792, %v815, %v494
      %v818 = vsel %vm792, %v816, %v509
      %v819 = vsel %vm795, %v817, %v540
      %v820 = vsel %vm795, %v818, %v555
      %v821 = vsel %vm798, %v819, %v586
      %v822 = vsel %vm798, %v820, %v601
      %v823 = vsel %vm801, %v821, %v632
      %v824 = vsel %vm801, %v822, %v647
      %v825 = vsel %vm804, %v823, %v678
      %v826 = vsel %vm804, %v824, %v693
      %v827 = vsel %vm807, %v825, %v724
      %v828 = vsel %vm807, %v826, %v739
      %v829 = vsel %vm810, %v827, %v770
      %v830 = vsel %vm810, %v828, %v785
      %v831 = vld [vmem:[#allocation2] sm:$0xff]
      %v832 = vld [vmem:[#allocation2 + $0x8] sm:$0xff]
      %835 = vrot.lane.b32.xlu0 %v811, 10
      %v836 = vpop.permute.xlu0 %835
      %837 = vrot.lane.b32.xlu0 %v812, 10
      %v838 = vpop.permute.xlu0 %837
      %vm841 = vcmask 80896
      %v842 = vsel %vm841, %v831, %v836
      %v843 = vsel %vm841, %v832, %v838
      %v844 = vld [vmem:[#allocation3] sm:$0xff]
      %v845 = vld [vmem:[#allocation3 + $0x8] sm:$0xff]
      %846 = vrot.lane.b32.xlu0 %v829, 10
      %v847 = vpop.permute.xlu0 %846
      %848 = vrot.lane.b32.xlu0 %v830, 10
      %v849 = vpop.permute.xlu0 %848
      %v850 = vsel %vm841, %v844, %v847
      %v851 = vsel %vm841, %v845, %v849
      %vm852 = vcmask 162816
      %v853 = vsel %vm852, %v842, inf
      %854 = vmin.xlane.f32.xlu0 %v853
      %v855 = vpop.xlane.xlu0 %854
      %v856 = vsel %vm852, %v843, inf
      %857 = vmin.xlane.f32.xlu0 %v856
      %v858 = vpop.xlane.xlu0 %857
      %vm859 = vcmp.eq.f32.partialorder %v842, %v855
      %vm860 = vcmp.eq.f32.partialorder %v843, %v858
      %v861 = vsel %vm859, %v850, 1073741824
      %v862 = vsel %vm860, %v851, 1073741824
      %v863 = vsel %vm852, %v861, 2147483647
      %v864 = vand.u32 %v863, 65535
      %v865 = vshra.s32 %v863, 16
      %v866 = vcvt.s32.f32 %v864
      %v867 = vcvt.s32.f32 %v865
      %868 = vmin.xlane.f32.xlu0 %v867
      %v869 = vpop.xlane.xlu0 %868
      %vm870 = vcmp.eq.f32.partialorder %v867, %v869
      %v871 = vsel %vm870, %v866, inf
      %872 = vmin.xlane.f32.xlu0 %v871
      %v873 = vpop.xlane.xlu0 %872
      %v874 = vcvt.f32.s32 %v873
      %v875 = vcvt.f32.s32 %v869
      %v876 = vshll.u32 %v875, 16
      %v877 = vadd.s32 %v876, %v874
      %v878 = vsel %vm852, %v862, 2147483647
      %v879 = vand.u32 %v878, 65535
      %v880 = vshra.s32 %v878, 16
      %v881 = vcvt.s32.f32 %v879
      %v882 = vcvt.s32.f32 %v880
      %883 = vmin.xlane.f32.xlu0 %v882
      %v884 = vpop.xlane.xlu0 %883
      %vm885 = vcmp.eq.f32.partialorder %v882, %v884
      %v886 = vsel %vm885, %v881, inf
      %887 = vmin.xlane.f32.xlu0 %v886
      %v888 = vpop.xlane.xlu0 %887
      %v889 = vcvt.f32.s32 %v888
      %v890 = vcvt.f32.s32 %v884
      %v891 = vshll.u32 %v890, 16
      %v892 = vadd.s32 %v891, %v889
      %vm893 = vcmp.eq.s32.totalorder %v850, %v877
      %vm894 = vcmp.eq.s32.totalorder %v851, %v892
      %vm895 = vmand %vm859, %vm893
      %vm896 = vmand %vm860, %vm894
      %v897 = vsel %vm895, inf, %v842
      %v898 = vsel %vm896, inf, %v843
      %v899 = vsel %vm852, %v897, inf
      %900 = vmin.xlane.f32.xlu0 %v899
      %v901 = vpop.xlane.xlu0 %900
      %v902 = vsel %vm852, %v898, inf
      %903 = vmin.xlane.f32.xlu0 %v902
      %v904 = vpop.xlane.xlu0 %903
      %vm905 = vcmp.eq.f32.partialorder %v897, %v901
      %vm906 = vcmp.eq.f32.partialorder %v898, %v904
      %v907 = vsel %vm905, %v850, 1073741824
      %v908 = vsel %vm906, %v851, 1073741824
      %v909 = vsel %vm852, %v907, 2147483647
      %v910 = vand.u32 %v909, 65535
      %v911 = vshra.s32 %v909, 16
      %v912 = vcvt.s32.f32 %v910
      %v913 = vcvt.s32.f32 %v911
      %914 = vmin.xlane.f32.xlu0 %v913
      %v915 = vpop.xlane.xlu0 %914
      %vm916 = vcmp.eq.f32.partialorder %v913, %v915
      %v917 = vsel %vm916, %v912, inf
      %918 = vmin.xlane.f32.xlu0 %v917
      %v919 = vpop.xlane.xlu0 %918
      %v920 = vcvt.f32.s32 %v919
      %v921 = vcvt.f32.s32 %v915
      %v922 = vshll.u32 %v921, 16
      %v923 = vadd.s32 %v922, %v920
      %v924 = vsel %vm852, %v908, 2147483647
      %v925 = vand.u32 %v924, 65535
      %v926 = vshra.s32 %v924, 16
      %v927 = vcvt.s32.f32 %v925
      %v928 = vcvt.s32.f32 %v926
      %929 = vmin.xlane.f32.xlu0 %v928
      %v930 = vpop.xlane.xlu0 %929
      %vm931 = vcmp.eq.f32.partialorder %v928, %v930
      %v932 = vsel %vm931, %v927, inf
      %933 = vmin.xlane.f32.xlu0 %v932
      %v934 = vpop.xlane.xlu0 %933
      %v935 = vcvt.f32.s32 %v934
      %v936 = vcvt.f32.s32 %v930
      %v937 = vshll.u32 %v936, 16
      %v938 = vadd.s32 %v937, %v935
      %vm939 = vcmp.eq.s32.totalorder %v850, %v923
      %vm940 = vcmp.eq.s32.totalorder %v851, %v938
      %vm941 = vmand %vm905, %vm939
      %vm942 = vmand %vm906, %vm940
      %v943 = vsel %vm941, inf, %v897
      %v944 = vsel %vm942, inf, %v898
      %v945 = vsel %vm852, %v943, inf
      %946 = vmin.xlane.f32.xlu0 %v945
      %v947 = vpop.xlane.xlu0 %946
      %v948 = vsel %vm852, %v944, inf
      %949 = vmin.xlane.f32.xlu0 %v948
      %v950 = vpop.xlane.xlu0 %949
      %vm951 = vcmp.eq.f32.partialorder %v943, %v947
      %vm952 = vcmp.eq.f32.partialorder %v944, %v950
      %v953 = vsel %vm951, %v850, 1073741824
      %v954 = vsel %vm952, %v851, 1073741824
      %v955 = vsel %vm852, %v953, 2147483647
      %v956 = vand.u32 %v955, 65535
      %v957 = vshra.s32 %v955, 16
      %v958 = vcvt.s32.f32 %v956
      %v959 = vcvt.s32.f32 %v957
      %960 = vmin.xlane.f32.xlu0 %v959
      %v961 = vpop.xlane.xlu0 %960
      %vm962 = vcmp.eq.f32.partialorder %v959, %v961
      %v963 = vsel %vm962, %v958, inf
      %964 = vmin.xlane.f32.xlu0 %v963
      %v965 = vpop.xlane.xlu0 %964
      %v966 = vcvt.f32.s32 %v965
      %v967 = vcvt.f32.s32 %v961
      %v968 = vshll.u32 %v967, 16
      %v969 = vadd.s32 %v968, %v966
      %v970 = vsel %vm852, %v954, 2147483647
      %v971 = vand.u32 %v970, 65535
      %v972 = vshra.s32 %v970, 16
      %v973 = vcvt.s32.f32 %v971
      %v974 = vcvt.s32.f32 %v972
      %975 = vmin.xlane.f32.xlu0 %v974
      %v976 = vpop.xlane.xlu0 %975
      %vm977 = vcmp.eq.f32.partialorder %v974, %v976
      %v978 = vsel %vm977, %v973, inf
      %979 = vmin.xlane.f32.xlu0 %v978
      %v980 = vpop.xlane.xlu0 %979
      %v981 = vcvt.f32.s32 %v980
      %v982 = vcvt.f32.s32 %v976
      %v983 = vshll.u32 %v982, 16
      %v984 = vadd.s32 %v983, %v981
      %vm985 = vcmp.eq.s32.totalorder %v850, %v969
      %vm986 = vcmp.eq.s32.totalorder %v851, %v984
      %vm987 = vmand %vm951, %vm985
      %vm988 = vmand %vm952, %vm986
      %v989 = vsel %vm987, inf, %v943
      %v990 = vsel %vm988, inf, %v944
      %v991 = vsel %vm852, %v989, inf
      %992 = vmin.xlane.f32.xlu0 %v991
      %v993 = vpop.xlane.xlu0 %992
      %v994 = vsel %vm852, %v990, inf
      %995 = vmin.xlane.f32.xlu0 %v994
      %v996 = vpop.xlane.xlu0 %995
      %vm997 = vcmp.eq.f32.partialorder %v989, %v993
      %vm998 = vcmp.eq.f32.partialorder %v990, %v996
      %v999 = vsel %vm997, %v850, 1073741824
      %v1000 = vsel %vm998, %v851, 1073741824
      %v1001 = vsel %vm852, %v999, 2147483647
      %v1002 = vand.u32 %v1001, 65535
      %v1003 = vshra.s32 %v1001, 16
      %v1004 = vcvt.s32.f32 %v1002
      %v1005 = vcvt.s32.f32 %v1003
      %1006 = vmin.xlane.f32.xlu0 %v1005
      %v1007 = vpop.xlane.xlu0 %1006
      %vm1008 = vcmp.eq.f32.partialorder %v1005, %v1007
      %v1009 = vsel %vm1008, %v1004, inf
      %1010 = vmin.xlane.f32.xlu0 %v1009
      %v1011 = vpop.xlane.xlu0 %1010
      %v1012 = vcvt.f32.s32 %v1011
      %v1013 = vcvt.f32.s32 %v1007
      %v1014 = vshll.u32 %v1013, 16
      %v1015 = vadd.s32 %v1014, %v1012
      %v1016 = vsel %vm852, %v1000, 2147483647
      %v1017 = vand.u32 %v1016, 65535
      %v1018 = vshra.s32 %v1016, 16
      %v1019 = vcvt.s32.f32 %v1017
      %v1020 = vcvt.s32.f32 %v1018
      %1021 = vmin.xlane.f32.xlu0 %v1020
      %v1022 = vpop.xlane.xlu0 %1021
      %vm1023 = vcmp.eq.f32.partialorder %v1020, %v1022
      %v1024 = vsel %vm1023, %v1019, inf
      %1025 = vmin.xlane.f32.xlu0 %v1024
      %v1026 = vpop.xlane.xlu0 %1025
      %v1027 = vcvt.f32.s32 %v1026
      %v1028 = vcvt.f32.s32 %v1022
      %v1029 = vshll.u32 %v1028, 16
      %v1030 = vadd.s32 %v1029, %v1027
      %vm1031 = vcmp.eq.s32.totalorder %v850, %v1015
      %vm1032 = vcmp.eq.s32.totalorder %v851, %v1030
      %vm1033 = vmand %vm997, %vm1031
      %vm1034 = vmand %vm998, %vm1032
      %v1035 = vsel %vm1033, inf, %v989
      %v1036 = vsel %vm1034, inf, %v990
      %v1037 = vsel %vm852, %v1035, inf
      %1038 = vmin.xlane.f32.xlu0 %v1037
      %v1039 = vpop.xlane.xlu0 %1038
      %v1040 = vsel %vm852, %v1036, inf
      %1041 = vmin.xlane.f32.xlu0 %v1040
      %v1042 = vpop.xlane.xlu0 %1041
      %vm1043 = vcmp.eq.f32.partialorder %v1035, %v1039
      %vm1044 = vcmp.eq.f32.partialorder %v1036, %v1042
      %v1045 = vsel %vm1043, %v850, 1073741824
      %v1046 = vsel %vm1044, %v851, 1073741824
      %v1047 = vsel %vm852, %v1045, 2147483647
      %v1048 = vand.u32 %v1047, 65535
      %v1049 = vshra.s32 %v1047, 16
      %v1050 = vcvt.s32.f32 %v1048
      %v1051 = vcvt.s32.f32 %v1049
      %1052 = vmin.xlane.f32.xlu0 %v1051
      %v1053 = vpop.xlane.xlu0 %1052
      %vm1054 = vcmp.eq.f32.partialorder %v1051, %v1053
      %v1055 = vsel %vm1054, %v1050, inf
      %1056 = vmin.xlane.f32.xlu0 %v1055
      %v1057 = vpop.xlane.xlu0 %1056
      %v1058 = vcvt.f32.s32 %v1057
      %v1059 = vcvt.f32.s32 %v1053
      %v1060 = vshll.u32 %v1059, 16
      %v1061 = vadd.s32 %v1060, %v1058
      %v1062 = vsel %vm852, %v1046, 2147483647
      %v1063 = vand.u32 %v1062, 65535
      %v1064 = vshra.s32 %v1062, 16
      %v1065 = vcvt.s32.f32 %v1063
      %v1066 = vcvt.s32.f32 %v1064
      %1067 = vmin.xlane.f32.xlu0 %v1066
      %v1068 = vpop.xlane.xlu0 %1067
      %vm1069 = vcmp.eq.f32.partialorder %v1066, %v1068
      %v1070 = vsel %vm1069, %v1065, inf
      %1071 = vmin.xlane.f32.xlu0 %v1070
      %v1072 = vpop.xlane.xlu0 %1071
      %v1073 = vcvt.f32.s32 %v1072
      %v1074 = vcvt.f32.s32 %v1068
      %v1075 = vshll.u32 %v1074, 16
      %v1076 = vadd.s32 %v1075, %v1073
      %vm1077 = vcmp.eq.s32.totalorder %v850, %v1061
      %vm1078 = vcmp.eq.s32.totalorder %v851, %v1076
      %vm1079 = vmand %vm1043, %vm1077
      %vm1080 = vmand %vm1044, %vm1078
      %v1081 = vsel %vm1079, inf, %v1035
      %v1082 = vsel %vm1080, inf, %v1036
      %v1083 = vsel %vm852, %v1081, inf
      %1084 = vmin.xlane.f32.xlu0 %v1083
      %v1085 = vpop.xlane.xlu0 %1084
      %v1086 = vsel %vm852, %v1082, inf
      %1087 = vmin.xlane.f32.xlu0 %v1086
      %v1088 = vpop.xlane.xlu0 %1087
      %vm1089 = vcmp.eq.f32.partialorder %v1081, %v1085
      %vm1090 = vcmp.eq.f32.partialorder %v1082, %v1088
      %v1091 = vsel %vm1089, %v850, 1073741824
      %v1092 = vsel %vm1090, %v851, 1073741824
      %v1093 = vsel %vm852, %v1091, 2147483647
      %v1094 = vand.u32 %v1093, 65535
      %v1095 = vshra.s32 %v1093, 16
      %v1096 = vcvt.s32.f32 %v1094
      %v1097 = vcvt.s32.f32 %v1095
      %1098 = vmin.xlane.f32.xlu0 %v1097
      %v1099 = vpop.xlane.xlu0 %1098
      %vm1100 = vcmp.eq.f32.partialorder %v1097, %v1099
      %v1101 = vsel %vm1100, %v1096, inf
      %1102 = vmin.xlane.f32.xlu0 %v1101
      %v1103 = vpop.xlane.xlu0 %1102
      %v1104 = vcvt.f32.s32 %v1103
      %v1105 = vcvt.f32.s32 %v1099
      %v1106 = vshll.u32 %v1105, 16
      %v1107 = vadd.s32 %v1106, %v1104
      %v1108 = vsel %vm852, %v1092, 2147483647
      %v1109 = vand.u32 %v1108, 65535
      %v1110 = vshra.s32 %v1108, 16
      %v1111 = vcvt.s32.f32 %v1109
      %v1112 = vcvt.s32.f32 %v1110
      %1113 = vmin.xlane.f32.xlu0 %v1112
      %v1114 = vpop.xlane.xlu0 %1113
      %vm1115 = vcmp.eq.f32.partialorder %v1112, %v1114
      %v1116 = vsel %vm1115, %v1111, inf
      %1117 = vmin.xlane.f32.xlu0 %v1116
      %v1118 = vpop.xlane.xlu0 %1117
      %v1119 = vcvt.f32.s32 %v1118
      %v1120 = vcvt.f32.s32 %v1114
      %v1121 = vshll.u32 %v1120, 16
      %v1122 = vadd.s32 %v1121, %v1119
      %vm1123 = vcmp.eq.s32.totalorder %v850, %v1107
      %vm1124 = vcmp.eq.s32.totalorder %v851, %v1122
      %vm1125 = vmand %vm1089, %vm1123
      %vm1126 = vmand %vm1090, %vm1124
      %v1127 = vsel %vm1125, inf, %v1081
      %v1128 = vsel %vm1126, inf, %v1082
      %v1129 = vsel %vm852, %v1127, inf
      %1130 = vmin.xlane.f32.xlu0 %v1129
      %v1131 = vpop.xlane.xlu0 %1130
      %v1132 = vsel %vm852, %v1128, inf
      %1133 = vmin.xlane.f32.xlu0 %v1132
      %v1134 = vpop.xlane.xlu0 %1133
      %vm1135 = vcmp.eq.f32.partialorder %v1127, %v1131
      %vm1136 = vcmp.eq.f32.partialorder %v1128, %v1134
      %v1137 = vsel %vm1135, %v850, 1073741824
      %v1138 = vsel %vm1136, %v851, 1073741824
      %v1139 = vsel %vm852, %v1137, 2147483647
      %v1140 = vand.u32 %v1139, 65535
      %v1141 = vshra.s32 %v1139, 16
      %v1142 = vcvt.s32.f32 %v1140
      %v1143 = vcvt.s32.f32 %v1141
      %1144 = vmin.xlane.f32.xlu0 %v1143
      %v1145 = vpop.xlane.xlu0 %1144
      %vm1146 = vcmp.eq.f32.partialorder %v1143, %v1145
      %v1147 = vsel %vm1146, %v1142, inf
      %1148 = vmin.xlane.f32.xlu0 %v1147
      %v1149 = vpop.xlane.xlu0 %1148
      %v1150 = vcvt.f32.s32 %v1149
      %v1151 = vcvt.f32.s32 %v1145
      %v1152 = vshll.u32 %v1151, 16
      %v1153 = vadd.s32 %v1152, %v1150
      %v1154 = vsel %vm852, %v1138, 2147483647
      %v1155 = vand.u32 %v1154, 65535
      %v1156 = vshra.s32 %v1154, 16
      %v1157 = vcvt.s32.f32 %v1155
      %v1158 = vcvt.s32.f32 %v1156
      %1159 = vmin.xlane.f32.xlu0 %v1158
      %v1160 = vpop.xlane.xlu0 %1159
      %vm1161 = vcmp.eq.f32.partialorder %v1158, %v1160
      %v1162 = vsel %vm1161, %v1157, inf
      %1163 = vmin.xlane.f32.xlu0 %v1162
      %v1164 = vpop.xlane.xlu0 %1163
      %v1165 = vcvt.f32.s32 %v1164
      %v1166 = vcvt.f32.s32 %v1160
      %v1167 = vshll.u32 %v1166, 16
      %v1168 = vadd.s32 %v1167, %v1165
      %vm1169 = vcmp.eq.s32.totalorder %v850, %v1153
      %vm1170 = vcmp.eq.s32.totalorder %v851, %v1168
      %vm1171 = vmand %vm1135, %vm1169
      %vm1172 = vmand %vm1136, %vm1170
      %v1173 = vsel %vm1171, inf, %v1127
      %v1174 = vsel %vm1172, inf, %v1128
      %v1175 = vsel %vm852, %v1173, inf
      %1176 = vmin.xlane.f32.xlu0 %v1175
      %v1177 = vpop.xlane.xlu0 %1176
      %v1178 = vsel %vm852, %v1174, inf
      %1179 = vmin.xlane.f32.xlu0 %v1178
      %v1180 = vpop.xlane.xlu0 %1179
      %vm1181 = vcmp.eq.f32.partialorder %v1173, %v1177
      %vm1182 = vcmp.eq.f32.partialorder %v1174, %v1180
      %v1183 = vsel %vm1181, %v850, 1073741824
      %v1184 = vsel %vm1182, %v851, 1073741824
      %v1185 = vsel %vm852, %v1183, 2147483647
      %v1186 = vand.u32 %v1185, 65535
      %v1187 = vshra.s32 %v1185, 16
      %v1188 = vcvt.s32.f32 %v1186
      %v1189 = vcvt.s32.f32 %v1187
      %1190 = vmin.xlane.f32.xlu0 %v1189
      %v1191 = vpop.xlane.xlu0 %1190
      %vm1192 = vcmp.eq.f32.partialorder %v1189, %v1191
      %v1193 = vsel %vm1192, %v1188, inf
      %1194 = vmin.xlane.f32.xlu0 %v1193
      %v1195 = vpop.xlane.xlu0 %1194
      %v1196 = vcvt.f32.s32 %v1195
      %v1197 = vcvt.f32.s32 %v1191
      %v1198 = vshll.u32 %v1197, 16
      %v1199 = vadd.s32 %v1198, %v1196
      %v1200 = vsel %vm852, %v1184, 2147483647
      %v1201 = vand.u32 %v1200, 65535
      %v1202 = vshra.s32 %v1200, 16
      %v1203 = vcvt.s32.f32 %v1201
      %v1204 = vcvt.s32.f32 %v1202
      %1205 = vmin.xlane.f32.xlu0 %v1204
      %v1206 = vpop.xlane.xlu0 %1205
      %vm1207 = vcmp.eq.f32.partialorder %v1204, %v1206
      %v1208 = vsel %vm1207, %v1203, inf
      %1209 = vmin.xlane.f32.xlu0 %v1208
      %v1210 = vpop.xlane.xlu0 %1209
      %v1211 = vcvt.f32.s32 %v1210
      %v1212 = vcvt.f32.s32 %v1206
      %v1213 = vshll.u32 %v1212, 16
      %v1214 = vadd.s32 %v1213, %v1211
      %vm1215 = vcmp.eq.s32.totalorder %v850, %v1199
      %vm1216 = vcmp.eq.s32.totalorder %v851, %v1214
      %vm1217 = vmand %vm1181, %vm1215
      %vm1218 = vmand %vm1182, %vm1216
      %v1219 = vsel %vm1217, inf, %v1173
      %v1220 = vsel %vm1218, inf, %v1174
      %v1221 = vsel %vm852, %v1219, inf
      %1222 = vmin.xlane.f32.xlu0 %v1221
      %v1223 = vpop.xlane.xlu0 %1222
      %v1224 = vsel %vm852, %v1220, inf
      %1225 = vmin.xlane.f32.xlu0 %v1224
      %v1226 = vpop.xlane.xlu0 %1225
      %vm1227 = vcmp.eq.f32.partialorder %v1219, %v1223
      %vm1228 = vcmp.eq.f32.partialorder %v1220, %v1226
      %v1229 = vsel %vm1227, %v850, 1073741824
      %v1230 = vsel %vm1228, %v851, 1073741824
      %v1231 = vsel %vm852, %v1229, 2147483647
      %v1232 = vand.u32 %v1231, 65535
      %v1233 = vshra.s32 %v1231, 16
      %v1234 = vcvt.s32.f32 %v1232
      %v1235 = vcvt.s32.f32 %v1233
      %1236 = vmin.xlane.f32.xlu0 %v1235
      %v1237 = vpop.xlane.xlu0 %1236
      %vm1238 = vcmp.eq.f32.partialorder %v1235, %v1237
      %v1239 = vsel %vm1238, %v1234, inf
      %1240 = vmin.xlane.f32.xlu0 %v1239
      %v1241 = vpop.xlane.xlu0 %1240
      %v1242 = vcvt.f32.s32 %v1241
      %v1243 = vcvt.f32.s32 %v1237
      %v1244 = vshll.u32 %v1243, 16
      %v1245 = vadd.s32 %v1244, %v1242
      %v1246 = vsel %vm852, %v1230, 2147483647
      %v1247 = vand.u32 %v1246, 65535
      %v1248 = vshra.s32 %v1246, 16
      %v1249 = vcvt.s32.f32 %v1247
      %v1250 = vcvt.s32.f32 %v1248
      %1251 = vmin.xlane.f32.xlu0 %v1250
      %v1252 = vpop.xlane.xlu0 %1251
      %vm1253 = vcmp.eq.f32.partialorder %v1250, %v1252
      %v1254 = vsel %vm1253, %v1249, inf
      %1255 = vmin.xlane.f32.xlu0 %v1254
      %v1256 = vpop.xlane.xlu0 %1255
      %v1257 = vcvt.f32.s32 %v1256
      %v1258 = vcvt.f32.s32 %v1252
      %v1259 = vshll.u32 %v1258, 16
      %v1260 = vadd.s32 %v1259, %v1257
      %vm1261 = vcmp.eq.s32.totalorder %v850, %v1245
      %vm1262 = vcmp.eq.s32.totalorder %v851, %v1260
      %vm1263 = vmand %vm1227, %vm1261
      %vm1264 = vmand %vm1228, %vm1262
      %v1265 = vsel %vm1263, inf, %v1219
      %v1266 = vsel %vm1264, inf, %v1220
      %v1267 = vsel %vm852, %v1265, inf
      %1268 = vmin.xlane.f32.xlu0 %v1267
      %v1269 = vpop.xlane.xlu0 %1268
      %v1270 = vsel %vm852, %v1266, inf
      %1271 = vmin.xlane.f32.xlu0 %v1270
      %v1272 = vpop.xlane.xlu0 %1271
      %vm1273 = vcmp.eq.f32.partialorder %v1265, %v1269
      %vm1274 = vcmp.eq.f32.partialorder %v1266, %v1272
      %v1275 = vsel %vm1273, %v850, 1073741824
      %v1276 = vsel %vm1274, %v851, 1073741824
      %v1277 = vsel %vm852, %v1275, 2147483647
      %v1278 = vand.u32 %v1277, 65535
      %v1279 = vshra.s32 %v1277, 16
      %v1280 = vcvt.s32.f32 %v1278
      %v1281 = vcvt.s32.f32 %v1279
      %1282 = vmin.xlane.f32.xlu0 %v1281
      %v1283 = vpop.xlane.xlu0 %1282
      %vm1284 = vcmp.eq.f32.partialorder %v1281, %v1283
      %v1285 = vsel %vm1284, %v1280, inf
      %1286 = vmin.xlane.f32.xlu0 %v1285
      %v1287 = vpop.xlane.xlu0 %1286
      %v1288 = vcvt.f32.s32 %v1287
      %v1289 = vcvt.f32.s32 %v1283
      %v1290 = vshll.u32 %v1289, 16
      %v1291 = vadd.s32 %v1290, %v1288
      %v1292 = vsel %vm852, %v1276, 2147483647
      %v1293 = vand.u32 %v1292, 65535
      %v1294 = vshra.s32 %v1292, 16
      %v1295 = vcvt.s32.f32 %v1293
      %v1296 = vcvt.s32.f32 %v1294
      %1297 = vmin.xlane.f32.xlu0 %v1296
      %v1298 = vpop.xlane.xlu0 %1297
      %vm1299 = vcmp.eq.f32.partialorder %v1296, %v1298
      %v1300 = vsel %vm1299, %v1295, inf
      %1301 = vmin.xlane.f32.xlu0 %v1300
      %v1302 = vpop.xlane.xlu0 %1301
      %v1303 = vcvt.f32.s32 %v1302
      %v1304 = vcvt.f32.s32 %v1298
      %v1305 = vshll.u32 %v1304, 16
      %v1306 = vadd.s32 %v1305, %v1303
      %v1307 = vsel %vm786, %v855, %v901
      %v1308 = vsel %vm786, %v858, %v904
      %v1309 = vsel %vm789, %v1307, %v947
      %v1310 = vsel %vm789, %v1308, %v950
      %v1311 = vsel %vm792, %v1309, %v993
      %v1312 = vsel %vm792, %v1310, %v996
      %v1313 = vsel %vm795, %v1311, %v1039
      %v1314 = vsel %vm795, %v1312, %v1042
      %v1315 = vsel %vm798, %v1313, %v1085
      %v1316 = vsel %vm798, %v1314, %v1088
      %v1317 = vsel %vm801, %v1315, %v1131
      %v1318 = vsel %vm801, %v1316, %v1134
      %v1319 = vsel %vm804, %v1317, %v1177
      %v1320 = vsel %vm804, %v1318, %v1180
      %v1321 = vsel %vm807, %v1319, %v1223
      %v1322 = vsel %vm807, %v1320, %v1226
      %v1323 = vsel %vm810, %v1321, %v1269
      %v1324 = vsel %vm810, %v1322, %v1272
      %1325 = vst.msk [vmem:[#allocation2] sm:$0xff] %vm841, %v1323
      %1326 = vst.msk [vmem:[#allocation2 + $0x8] sm:$0xff] %vm841, %v1324
      %v1327 = vsel %vm786, %v877, %v923
      %v1328 = vsel %vm786, %v892, %v938
      %v1329 = vsel %vm789, %v1327, %v969
      %v1330 = vsel %vm789, %v1328, %v984
      %v1331 = vsel %vm792, %v1329, %v1015
      %v1332 = vsel %vm792, %v1330, %v1030
      %v1333 = vsel %vm795, %v1331, %v1061
      %v1334 = vsel %vm795, %v1332, %v1076
      %v1335 = vsel %vm798, %v1333, %v1107
      %v1336 = vsel %vm798, %v1334, %v1122
      %v1337 = vsel %vm801, %v1335, %v1153
      %v1338 = vsel %vm801, %v1336, %v1168
      %v1339 = vsel %vm804, %v1337, %v1199
      %v1340 = vsel %vm804, %v1338, %v1214
      %v1341 = vsel %vm807, %v1339, %v1245
      %v1342 = vsel %vm807, %v1340, %v1260
      %v1343 = vsel %vm810, %v1341, %v1291
      %v1344 = vsel %vm810, %v1342, %v1306
      %1345 = vst.msk [vmem:[#allocation3] sm:$0xff] %vm841, %v1343
      %1346 = vst.msk [vmem:[#allocation3 + $0x8] sm:$0xff] %vm841, %v1344
      // Predicated region
      $region33: #{geometric_extractor.2} parent=27 // pred_check
        %p1347 = pneg %p218
      $region34: #{geometric_extractor.2} parent=27 // pred_check_branch
        %1349 = sbr.rel (%p1347) target = $region36
      $region35: #{geometric_extractor.2} parent=27 // pred_region
        %v1350 = vld [vmem:[#allocation3] sm:$0xff]
        %v1351 = vld [vmem:[#allocation3 + $0x8] sm:$0xff]
        %1352 = vst.msk [vmem:[%s216] sm:$0xff] %vm841, %v1350
        %1353 = vst.msk [vmem:[%s216 + $0x8] sm:$0xff] %vm841, %v1351
      $region36: #{geometric_extractor.2} parent=27 // pred_fallthru
        _
      %s1354 = smul.u32 2, %s19
      %p1355 = scmp.lt.s32.totalorder %s18, 1
      %s1356 = scalar_select %p1355, %s18, 1
      %p1357 = scmp.lt.s32.totalorder %s1354, 1
      %s1358 = scalar_select %p1357, %s1354, 1
      %s1359 = smul.addr %s1356, 2
      %s1360 = sadd.s32 %s1358, %s1359
      %s1361 = smul.addr %s1360, 8
      %s1362 = scalar_lea.vmem %s2, %s1361
      // Predicated region
      $region37: #{geometric_extractor.2} parent=27 // pred_check
        %p1363 = pneg %p108
      $region38: #{geometric_extractor.2} parent=27 // pred_check_branch
        %1365 = sbr.rel (%p1363) target = $region40
      $region39: #{geometric_extractor.2} parent=27 // pred_region
        %s1366 = smul.u32 2, %s19
      $region40: #{geometric_extractor.2} parent=27 // pred_fallthru
        _
    $region28: #{geometric_extractor.2} parent=5 // pred_fallthru
      _
    %p1367 = scmp.le.s32.totalorder 2, %s8
    // Predicated region
    $region41: #{geometric_extractor.2} parent=5 // pred_check
      %p1368 = pneg %p1367
    $region42: #{geometric_extractor.2} parent=5 // pred_check_branch
      %1370 = sbr.rel (%p1368) target = $region44
    $region43: #{geometric_extractor.2} parent=5 // pred_region
      %s1371 = ssub.s32 %s8, 2
      // Predicated region
      $region45: #{geometric_extractor.2} parent=43 // pred_check
        %p1372 = pneg %p114
      $region46: #{geometric_extractor.2} parent=43 // pred_check_branch
        %1374 = sbr.rel (%p1372) target = $region48
      $region47: #{geometric_extractor.2} parent=43 // pred_region
        %s1375 = smul.u32 2, %s22
        %p1376 = scmp.lt.s32.totalorder %s21, 1
        %s1377 = scalar_select %p1376, %s21, 1
        %p1378 = scmp.lt.s32.totalorder %s1375, 1
        %s1379 = scalar_select %p1378, %s1375, 1
        %s1380 = smul.addr %s1377, 2
        %s1381 = sadd.s32 %s1379, %s1380
        %s1382 = smul.addr %s1381, 8
        %s1383 = scalar_lea.vmem %s2, %s1382
      $region48: #{geometric_extractor.2} parent=43 // pred_fallthru
        _
    $region44: #{geometric_extractor.2} parent=5 // pred_fallthru
      _
  $region6: #{geometric_extractor.2} parent=0 // loop_footer
    %s12 = sadd.s32 1, %s8
  $region7: #{geometric_extractor.2} parent=0 // loop_footer_branch
    %7 = sbr.rel target = $region3
  $region8: #{geometric_extractor.2} parent=0 // loop_exit
    _

// kernel: geometric_extractor.3
$region0: #{geometric_extractor.3}
  #allocation0 [shape = 'u32[]', space=smem, size = 0x4, offset = 0x4, fixed_abs, tag = 'smem constant byte address 0x4 - core index']
  #allocation1 [shape = 'u32[144,128]{1,0:T(1,128)}', space=vmem, size = 0x12000, scoped, tag = 'internal scratch']
  %s0 = inlined_call_operand.vmem [shape: f32[2,3,9,16], index: 0, kind: input, shape index: {}]
  %s1 = inlined_call_operand.vmem [shape: f32[2,6,16], index: 1, kind: output, shape index: {}]
  %s2 = sld [smem:[#allocation0]]
  $region37: #{geometric_extractor.3} parent=0
    _
  %s4 = ssub.s32 1, %s2
  %s5 = scalar_select 0, %s4, %s2
  loop: start=0, step=1, limit=4
  $region2: #{geometric_extractor.3} parent=0 // loop_pre_header
    _
  $region3: #{geometric_extractor.3} parent=0 // loop_header
    %s7 = sphi 0, %s11
    %p8 = scmp.ge.s32.totalorder %s7, 4
    %s14 = sphi 0, %s26
    %s15 = sphi 0, %s22
    %s16 = sphi 0, %s14
    %s17 = sphi 0, %s15
    %s18 = sphi 0, %s16
    %s19 = sphi 0, %s17
    %s31 = sphi 0, %s33
    %s34 = sphi 0, %s31
    %s35 = sphi 0, %s34
    %s51 = sphi 0, %s35
    %s59 = sphi 0, %s61
    %s62 = sphi 0, %s59
    %s63 = sphi 0, %s62
    %s79 = sphi 0, %s63
  $region4: #{geometric_extractor.3} parent=0 // loop_header_branch
    %10 = sbr.rel (%p8) target = $region8
  $region5: #{geometric_extractor.3} parent=0 // loop_body
    %s12 = ssub.s32 %s7, 1
    %s13 = ssub.s32 %s7, 2
    %s20 = sadd.s32 1, %s15
    %p21 = scmp.ge.s32.totalorder %s20, 1
    %s22 = scalar_select %p21, 0, %s20
    %s23 = sadd.s32 1, %s14
    %s24 = scalar_select %p21, %s23, %s14
    %p25 = scmp.ge.s32.totalorder %s24, 2
    %s26 = scalar_select %p25, 0, %s24
    %s27 = ssub.s32 %s14, %s26
    %s28 = ssub.s32 %s15, %s22
    %s29 = sor.u32 %s27, %s28
    %p30 = scmp.eq.s32.totalorder %s29, 0
    %s32 = sadd.s32 %s31, 1
    %s33 = scalar_select %p30, %s31, %s32
    %p36 = pneg %p30
    %p37 = scmp.eq.s32.totalorder %s7, 1
    %p38 = por %p36, %p37
    %p39 = scmp.ne.s32.totalorder %s31, %s34
    %p40 = scmp.eq.s32.totalorder %s7, 0
    %p41 = por %p39, %p40
    %p42 = scmp.ne.s32.totalorder %s31, %s34
    %p43 = scmp.eq.s32.totalorder %s12, 1
    %p44 = por %p42, %p43
    %p45 = scmp.ne.s32.totalorder %s34, %s35
    %p46 = scmp.eq.s32.totalorder %s12, 0
    %p47 = por %p45, %p46
    %p48 = scmp.ne.s32.totalorder %s34, %s35
    %p49 = scmp.eq.s32.totalorder %s13, 1
    %p50 = por %p48, %p49
    %p52 = scmp.ne.s32.totalorder %s35, %s51
    %p53 = scmp.eq.s32.totalorder %s13, 0
    %p54 = por %p52, %p53
    %s55 = ssub.s32 %s14, %s26
    %s56 = ssub.s32 %s15, %s22
    %s57 = sor.u32 %s55, %s56
    %p58 = scmp.eq.s32.totalorder %s57, 0
    %s60 = sadd.s32 %s59, 1
    %s61 = scalar_select %p58, %s59, %s60
    %p64 = pneg %p58
    %p65 = scmp.eq.s32.totalorder %s7, 1
    %p66 = por %p64, %p65
    %p67 = scmp.ne.s32.totalorder %s59, %s62
    %p68 = scmp.eq.s32.totalorder %s7, 0
    %p69 = por %p67, %p68
    %p70 = scmp.ne.s32.totalorder %s59, %s62
    %p71 = scmp.eq.s32.totalorder %s12, 1
    %p72 = por %p70, %p71
    %p73 = scmp.ne.s32.totalorder %s62, %s63
    %p74 = scmp.eq.s32.totalorder %s12, 0
    %p75 = por %p73, %p74
    %p76 = scmp.ne.s32.totalorder %s62, %s63
    %p77 = scmp.eq.s32.totalorder %s13, 1
    %p78 = por %p76, %p77
    %p80 = scmp.ne.s32.totalorder %s63, %s79
    %p81 = scmp.eq.s32.totalorder %s13, 0
    %p82 = por %p80, %p81
    %p83 = scmp.le.s32.totalorder 1, %s7
    %p84 = scmp.lt.s32.totalorder %s7, 3
    %p85 = pnand %p83, %p84
    %p86 = pneg %p85
    // Predicated region
    $region9: #{geometric_extractor.3} parent=5 // pred_check
      _
    $region10: #{geometric_extractor.3} parent=5 // pred_check_branch
      %88 = sbr.rel (%p85) target = $region12
    $region11: #{geometric_extractor.3} parent=5 // pred_region
      %s89 = ssub.s32 %s7, 1
    $region12: #{geometric_extractor.3} parent=5 // pred_fallthru
      _
    %p90 = scmp.lt.s32.totalorder %s7, 2
    // Predicated region
    $region13: #{geometric_extractor.3} parent=5 // pred_check
      %p91 = pneg %p90
    $region14: #{geometric_extractor.3} parent=5 // pred_check_branch
      %93 = sbr.rel (%p91) target = $region16
    $region15: #{geometric_extractor.3} parent=5 // pred_region
      // Predicated region
      $region17: #{geometric_extractor.3} parent=15 // pred_check
        %p94 = pneg %p41
      $region18: #{geometric_extractor.3} parent=15 // pred_check_branch
        %96 = sbr.rel (%p94) target = $region20
      $region19: #{geometric_extractor.3} parent=15 // pred_region
        %p97 = scmp.lt.s32.totalorder %s14, 1
        %s98 = scalar_select %p97, %s14, 1
        %p99 = scmp.lt.s32.totalorder %s15, 0
        %s100 = scalar_select %p99, %s15, 0
        %s101 = smul.addr %s98, 6
        %s102 = sadd.s32 %s100, %s101
        %s103 = smul.addr %s102, 8
        %s104 = scalar_lea.vmem %s0, %s103
      $region20: #{geometric_extractor.3} parent=15 // pred_fallthru
        _
    $region16: #{geometric_extractor.3} parent=5 // pred_fallthru
      _
    %p105 = scmp.le.s32.totalorder 1, %s7
    %p106 = scmp.lt.s32.totalorder %s7, 3
    %p107 = pnand %p105, %p106
    %p108 = pneg %p107
    // Predicated region
    $region21: #{geometric_extractor.3} parent=5 // pred_check
      _
    $region22: #{geometric_extractor.3} parent=5 // pred_check_branch
      %110 = sbr.rel (%p107) target = $region24
    $region23: #{geometric_extractor.3} parent=5 // pred_region
      %s111 = ssub.s32 %s7, 1
      %p112 = scmp.lt.s32.totalorder %s16, 1
      %s113 = scalar_select %p112, %s16, 1
      %p114 = scmp.lt.s32.totalorder %s17, 0
      %s115 = scalar_select %p114, %s17, 0
      %s116 = smul.addr %s113, 6
      %s117 = sadd.s32 %s115, %s116
      %s118 = smul.addr %s117, 8
      %s119 = scalar_lea.vmem %s0, %s118
      %p120 = pneg %p47
      %p121 = pneg %p44
      %p122 = pneg %p75
      %p123 = pneg %p72
      %p124 = scmp.lt.s32.totalorder %s16, 1
      %s125 = scalar_select %p124, %s16, 1
      %p126 = scmp.lt.s32.totalorder %s17, 0
      %s127 = scalar_select %p126, %s17, 0
      %s128 = sadd.s32 %s127, %s125
      %s129 = smul.addr %s128, 8
      %s130 = scalar_lea.vmem %s1, %s129
      %p131 = scmp.lt.s32.totalorder %s16, 1
      %s132 = scalar_select %p131, %s16, 1
      %p133 = scmp.lt.s32.totalorder %s17, 0
      %s134 = scalar_select %p133, %s17, 0
      %s135 = smul.addr %s132, 6
      %s136 = sadd.s32 %s134, %s135
      %s137 = smul.addr %s136, 8
      %s138 = scalar_lea.vmem %s0, %s137
      %p139 = scmp.lt.s32.totalorder %s16, 1
      %s140 = scalar_select %p139, %s16, 1
      %p141 = scmp.lt.s32.totalorder %s17, 0
      %s142 = scalar_select %p141, %s17, 0
      %s143 = sadd.s32 %s142, %s140
      %s144 = smul.addr %s143, 8
      %s145 = scalar_lea.vmem %s1, %s144
      %v146 = vld [vmem:[%s138] sm:$0xff]
      %v147 = vld [vmem:[%s138 + $0x8] sm:$0x1]
      %v148 = vld [vmem:[%s138 + $0x10] sm:$0xff]
      %v149 = vld [vmem:[%s138 + $0x18] sm:$0x1]
      %v150 = vld [vmem:[%s138 + $0x20] sm:$0xff]
      %v151 = vld [vmem:[%s138 + $0x28] sm:$0x1]
      %vm154 = vcmask 1046528
      %v155 = vrot.slane %v146, 1
      %v156 = vrot.slane %v147, 1
      %v157 = vsel %vm154, %v155, %v156
      %v161 = vrot.slane %v148, 1
      %v162 = vrot.slane %v149, 1
      %v163 = vsel %vm154, %v161, %v162
      %v167 = vrot.slane %v150, 1
      %v168 = vrot.slane %v151, 1
      %v169 = vsel %vm154, %v167, %v168
      %vm171 = vcmask 130048
      %v172 = vsel %vm171, %v146, 0.0
      %vm173 = vcmask 122880
      %v174 = vsel %vm173, %v147, 0.0
      %v175 = vadd.f32 %v172, %v174
      %v176 = vrot.slane %v175, 4
      %v177 = vadd.f32 %v175, %v176
      %v178 = vrot.slane %v177, 2
      %v179 = vadd.f32 %v177, %v178
      %v180 = vrot.slane %v179, 1
      %v181 = vadd.f32 %v179, %v180
      %v182 = vmul.f32 %v181, 0.11111111
      %v183 = vsel %vm171, %v148, 0.0
      %v184 = vsel %vm173, %v149, 0.0
      %v185 = vadd.f32 %v183, %v184
      %v186 = vrot.slane %v185, 4
      %v187 = vadd.f32 %v185, %v186
      %v188 = vrot.slane %v187, 2
      %v189 = vadd.f32 %v187, %v188
      %v190 = vrot.slane %v189, 1
      %v191 = vadd.f32 %v189, %v190
      %v192 = vmul.f32 %v191, 0.11111111
      %v193 = vsel %vm171, %v150, 0.0
      %v194 = vsel %vm173, %v151, 0.0
      %v195 = vadd.f32 %v193, %v194
      %v196 = vrot.slane %v195, 4
      %v197 = vadd.f32 %v195, %v196
      %v198 = vrot.slane %v197, 2
      %v199 = vadd.f32 %v197, %v198
      %v200 = vrot.slane %v199, 1
      %v201 = vadd.f32 %v199, %v200
      %v202 = vmul.f32 %v201, 0.11111111
      %v203 = vmul.f32 %v148, %v169
      %v204 = vmul.f32 %v149, %v150
      %v205 = vmul.f32 %v150, %v163
      %v206 = vmul.f32 %v151, %v148
      %v207 = vsub.f32 %v203, %v205
      %v208 = vsub.f32 %v204, %v206
      %v209 = vmul.f32 %v150, %v157
      %v210 = vmul.f32 %v151, %v146
      %v211 = vmul.f32 %v146, %v169
      %v212 = vmul.f32 %v147, %v150
      %v213 = vsub.f32 %v209, %v211
      %v214 = vsub.f32 %v210, %v212
      %v215 = vmul.f32 %v146, %v163
      %v216 = vmul.f32 %v147, %v148
      %v217 = vmul.f32 %v148, %v157
      %v218 = vmul.f32 %v149, %v146
      %v219 = vsub.f32 %v215, %v217
      %v220 = vsub.f32 %v216, %v218
      %v221 = vmul.f32 %v207, %v207
      %v222 = vmul.f32 %v208, %v208
      %v223 = vmul.f32 %v213, %v213
      %v224 = vmul.f32 %v214, %v214
      %v225 = vadd.f32 %v221, %v223
      %v226 = vadd.f32 %v222, %v224
      %v227 = vmul.f32 %v219, %v219
      %v228 = vmul.f32 %v220, %v220
      %v229 = vadd.f32 %v225, %v227
      %v230 = vadd.f32 %v226, %v228
      %v231 = vrsqrt.pop %v229
      %v232 = vmul.f32 %v229, %v231
      %vm233 = vcmp.eq.f32.partialorder %v229, inf
      %v234 = vsel %vm233, %v229, %v232
      %vm235 = vcmp.eq.f32.partialorder %v229, 0.0
      %v236 = vand.u32 %v229, 2147483648
      %v237 = vsel %vm235, %v236, %v234
      %v238 = vrsqrt.pop %v230
      %v239 = vmul.f32 %v230, %v238
      %vm240 = vcmp.eq.f32.partialorder %v230, inf
      %v241 = vsel %vm240, %v230, %v239
      %vm242 = vcmp.eq.f32.partialorder %v230, 0.0
      %v243 = vand.u32 %v230, 2147483648
      %v244 = vsel %vm242, %v243, %v241
      %v245 = vadd.f32 %v237, 1e-06
      %v246 = vadd.f32 %v244, 1e-06
      %v247 = vrcp.pop %v245
      %v248 = vmul.f32 1.0, %v247
      %v249 = vrcp.pop %v246
      %v250 = vmul.f32 1.0, %v249
      %v251 = vadd.f32 %v150, %v169
      %v252 = vadd.f32 %v151, %v150
      %vm253 = vcmp.gt.f32.partialorder %v251, 0.0
      %vm254 = vcmp.gt.f32.partialorder %v252, 0.0
      %v255 = vsub.f32 0.0, %v248
      %v256 = vsub.f32 0.0, %v250
      %v257 = vsel %vm253, %v248, %v255
      %v258 = vsel %vm254, %v250, %v256
      %v259 = vmul.f32 %v207, %v257
      %v260 = vmul.f32 %v208, %v258
      %v261 = vmul.f32 %v213, %v257
      %v262 = vmul.f32 %v214, %v258
      %v263 = vmul.f32 %v219, %v257
      %v264 = vmul.f32 %v220, %v258
      %v265 = vsel %vm171, %v259, 0.0
      %v266 = vsel %vm173, %v260, 0.0
      %v267 = vadd.f32 %v265, %v266
      %v268 = vrot.slane %v267, 4
      %v269 = vadd.f32 %v267, %v268
      %v270 = vrot.slane %v269, 2
      %v271 = vadd.f32 %v269, %v270
      %v272 = vrot.slane %v271, 1
      %v273 = vadd.f32 %v271, %v272
      %v274 = vmul.f32 %v273, 0.11111111
      %v275 = vsel %vm171, %v261, 0.0
      %v276 = vsel %vm173, %v262, 0.0
      %v277 = vadd.f32 %v275, %v276
      %v278 = vrot.slane %v277, 4
      %v279 = vadd.f32 %v277, %v278
      %v280 = vrot.slane %v279, 2
      %v281 = vadd.f32 %v279, %v280
      %v282 = vrot.slane %v281, 1
      %v283 = vadd.f32 %v281, %v282
      %v284 = vmul.f32 %v283, 0.11111111
      %v285 = vsel %vm171, %v263, 0.0
      %v286 = vsel %vm173, %v264, 0.0
      %v287 = vadd.f32 %v285, %v286
      %v288 = vrot.slane %v287, 4
      %v289 = vadd.f32 %v287, %v288
      %v290 = vrot.slane %v289, 2
      %v291 = vadd.f32 %v289, %v290
      %v292 = vrot.slane %v291, 1
      %v293 = vadd.f32 %v291, %v292
      %v294 = vmul.f32 %v293, 0.11111111
      %vm295 = vcmask 1040384
      %v296 = vsel %vm295, %v182, %v192
      %vm297 = vcmask 1041408
      %v298 = vsel %vm297, %v296, %v202
      %vm299 = vcmask 1042432
      %v300 = vsel %vm299, %v298, %v274
      %vm301 = vcmask 1043456
      %v302 = vsel %vm301, %v300, %v284
      %vm303 = vcmask 1044480
      %v304 = vsel %vm303, %v302, %v294
      %vm305 = vcmask 128000
      %306 = vst.msk [vmem:[%s145] sm:$0x3f] %vm305, %v304
      %p307 = scmp.lt.s32.totalorder %s16, 1
      %s308 = scalar_select %p307, %s16, 1
      %p309 = scmp.lt.s32.totalorder %s17, 0
      %s310 = scalar_select %p309, %s17, 0
      %s311 = sadd.s32 %s310, %s308
      %s312 = smul.addr %s311, 8
      %s313 = scalar_lea.vmem %s1, %s312
      // Predicated region
      $region25: #{geometric_extractor.3} parent=23 // pred_check
        %p314 = pneg %p72
      $region26: #{geometric_extractor.3} parent=23 // pred_check_branch
        %316 = sbr.rel (%p314) target = $region28
      $region27: #{geometric_extractor.3} parent=23 // pred_region
        _
      $region28: #{geometric_extractor.3} parent=23 // pred_fallthru
        _
    $region24: #{geometric_extractor.3} parent=5 // pred_fallthru
      _
    %p317 = scmp.le.s32.totalorder 2, %s7
    // Predicated region
    $region29: #{geometric_extractor.3} parent=5 // pred_check
      %p318 = pneg %p317
    $region30: #{geometric_extractor.3} parent=5 // pred_check_branch
      %320 = sbr.rel (%p318) target = $region32
    $region31: #{geometric_extractor.3} parent=5 // pred_region
      %s321 = ssub.s32 %s7, 2
      // Predicated region
      $region33: #{geometric_extractor.3} parent=31 // pred_check
        %p322 = pneg %p78
      $region34: #{geometric_extractor.3} parent=31 // pred_check_branch
        %324 = sbr.rel (%p322) target = $region36
      $region35: #{geometric_extractor.3} parent=31 // pred_region
        %p325 = scmp.lt.s32.totalorder %s18, 1
        %s326 = scalar_select %p325, %s18, 1
        %p327 = scmp.lt.s32.totalorder %s19, 0
        %s328 = scalar_select %p327, %s19, 0
        %s329 = sadd.s32 %s328, %s326
        %s330 = smul.addr %s329, 8
        %s331 = scalar_lea.vmem %s1, %s330
      $region36: #{geometric_extractor.3} parent=31 // pred_fallthru
        _
    $region32: #{geometric_extractor.3} parent=5 // pred_fallthru
      _
  $region6: #{geometric_extractor.3} parent=0 // loop_footer
    %s11 = sadd.s32 1, %s7
  $region7: #{geometric_extractor.3} parent=0 // loop_footer_branch
    %6 = sbr.rel target = $region3
  $region8: #{geometric_extractor.3} parent=0 // loop_exit
    _

</llo_original>
